<compile_context>
chip_gen: v7x
topology: tpu7x:2x2x1
jax: 0.10.0
libtpu: 0.0.40
codegen_flags: <defaults>
</compile_context>

<pallas_src>
import math
import jax
import jax.numpy as jnp
from jax.experimental import pallas as pl
from jax.experimental.pallas import tpu as pltpu

# ----- hyperparameters (small, consistent with the module's constructor) -----
EMBED_DIM   = 16                 # embed_dim
D_MODEL     = 32                 # d_model
NHEAD       = 4                  # nhead
HEAD_DIM    = D_MODEL // NHEAD   # 8
DIM_FF      = 32                 # dim_feedforward
EMBED_DIM2D = 4                  # embed_dim_2d
LN_EPS      = 1e-5               # layer_norm_eps
SEQ_L       = 8
BATCH       = 2
W_T         = 1.0 / math.sqrt(D_MODEL)   # dp_attn_norm == 'd_model'

# ----- packed weight-slab layout (row starts are multiples of 8) -------------
ROW_WQKV = 0                                    # (E, 3*D)          rows   0:16
ROW_W2D  = 16                                   # (NH*L*C2D, L)     rows  16:144
ROW_WL1  = ROW_W2D + NHEAD * SEQ_L * EMBED_DIM2D   # (E, DIM_FF)    rows 144:160
ROW_WL2  = ROW_WL1 + EMBED_DIM                  # (DIM_FF, E)       rows 160:192
ROW_WO   = ROW_WL2 + DIM_FF                     # (D, E)            rows 192:224
W_ROWS   = ROW_WO + D_MODEL                     # 224
W_LANES  = 128


def idpgan_block_kernel(s_ref, prep_ref, w_ref, vp_ref, o_ref):
    L, B, E, D = SEQ_L, BATCH, EMBED_DIM, D_MODEL
    HD, NH, C2D = HEAD_DIM, NHEAD, EMBED_DIM2D

    s_rows = s_ref[...]                                        # (B*L, E) f32, rows (b, i)

    # --- packed parameter slabs: static ref slices (one DMA per slab) --------
    wqkv = w_ref[ROW_WQKV:ROW_WQKV + E, 0:3 * D]               # (E, 3D)   bf16
    w2ds = w_ref[ROW_W2D:ROW_W2D + NH * L * C2D, 0:L]          # (128, L)  bf16
    wl1  = w_ref[ROW_WL1:ROW_WL1 + E, 0:DIM_FF]                # (E, FF)   bf16
    wl2  = w_ref[ROW_WL2:ROW_WL2 + DIM_FF, 0:E]                # (FF, E)   bf16
    wo   = w_ref[ROW_WO:ROW_WO + D, 0:E]                       # (D, E)    bf16
    bo   = vp_ref[0:1, 0:E]                                    # f32 vectors
    g1   = vp_ref[1:2, 0:E]
    be1  = vp_ref[2:3, 0:E]
    bl1  = vp_ref[3:4, 0:DIM_FF]
    bl2  = vp_ref[4:5, 0:E]
    g2   = vp_ref[5:6, 0:E]
    be2  = vp_ref[6:7, 0:E]

    # --- fused QKV: one MXU dot for all batches / heads ----------------------
    qkv = jnp.dot(s_rows.astype(jnp.bfloat16), wqkv,
                  preferred_element_type=jnp.float32)          # (B*L, 3D) f32
    q = qkv[:, 0:D] * W_T                                      # 'd_model' scaling
    k = qkv[:, D:2 * D]
    v = qkv[:, 2 * D:3 * D]

    # --- pairwise bias (mlp_2d) directly in the stacked (b,h,i) x j layout ---
    # bias_stk[(b,h,i), j] == mlp_2d(p)[b, i, j, h] (without b2d, which is
    # constant along j and cancels in softmax).
    bias_stk = jnp.dot(prep_ref[...], w2ds,
                       preferred_element_type=jnp.float32)     # (B*NH*L, L) f32

    # --- scores: 8 independent (L,L) dots stacked along sublanes -------------
    aff_tiles = []
    for b in range(B):
        rb = slice(b * L, (b + 1) * L)
        for h in range(NH):
            ch = slice(h * HD, (h + 1) * HD)
            aff_tiles.append(jnp.dot(q[rb, ch], k[rb, ch].T,
                                     preferred_element_type=jnp.float32))
    aff = jnp.concatenate(aff_tiles, axis=0) + bias_stk        # (B*NH*L, L)

    # --- ONE stacked softmax pass (single max / exp / sum / reciprocal) ------
    aff = aff - jnp.max(aff, axis=-1, keepdims=True)
    ex = jnp.exp(aff)
    attn = ex * pl.reciprocal(jnp.sum(ex, axis=-1, keepdims=True), approx=True)

    # --- attn @ V, reassembled to (B*L, D): rows (b, i), lanes (h, d) --------
    ctx_rows = []
    for b in range(B):
        rb = slice(b * L, (b + 1) * L)
        head_out = []
        for h in range(NH):
            n = b * NH + h
            head_out.append(jnp.dot(attn[n * L:(n + 1) * L, :],
                                    v[rb, h * HD:(h + 1) * HD],
                                    preferred_element_type=jnp.float32))
        ctx_rows.append(jnp.concatenate(head_out, axis=-1))
    ctx = jnp.concatenate(ctx_rows, axis=0)                    # (B*L, D)

    # --- output projection + residual + LayerNorm 1 --------------------------
    attn_out = jnp.dot(ctx.astype(jnp.bfloat16), wo,
                       preferred_element_type=jnp.float32) + bo
    s1 = s_rows + attn_out
    mu = jnp.mean(s1, axis=-1, keepdims=True)
    var = jnp.mean((s1 - mu) ** 2, axis=-1, keepdims=True)
    s1 = (s1 - mu) * jax.lax.rsqrt(var + LN_EPS) * g1 + be1

    # --- update module: linear1 -> relu -> (dropout = identity) -> linear2 ---
    h1 = jnp.dot(s1.astype(jnp.bfloat16), wl1,
                 preferred_element_type=jnp.float32) + bl1
    h1 = jnp.maximum(h1, 0.0)
    ff = jnp.dot(h1.astype(jnp.bfloat16), wl2,
                 preferred_element_type=jnp.float32) + bl2

    # --- residual + LayerNorm 2, single full-tile store -----------------------
    s2 = s1 + ff
    mu2 = jnp.mean(s2, axis=-1, keepdims=True)
    var2 = jnp.mean((s2 - mu2) ** 2, axis=-1, keepdims=True)
    o_ref[...] = (s2 - mu2) * jax.lax.rsqrt(var2 + LN_EPS) * g2 + be2


def idpgan_block(s, p, P):
    """s: (L, B, E) f32, p: (B, L, L, C2D) f32  ->  (L, B, E) f32. Inference."""
    L, B, E = s.shape
    C2D = p.shape[-1]
    # The kernel bakes the hyperparameters in; fail loudly on a shape mismatch.
    assert (L, B, E) == (SEQ_L, BATCH, EMBED_DIM), (s.shape,)
    assert p.shape == (BATCH, SEQ_L, SEQ_L, EMBED_DIM2D), (p.shape,)

    # --- activation plumbing (fused XLA ops; no arithmetic hoisted) ----------
    s2 = jnp.transpose(s, (1, 0, 2)).reshape(B * L, E)         # rows (b, i)
    # Block-diagonal head expansion of p: rows (b, h, i), lanes (h', j, c).
    # This is a repeat + mask only (the mlp_2d matmul stays inside the kernel)
    # and lets the kernel emit the pairwise bias with ONE dot directly in the
    # stacked score layout.
    eye_h = jnp.eye(NHEAD, dtype=p.dtype)
    p_rep = jnp.einsum("bijc,hH->bhiHjc", p, eye_h)
    p_rep = p_rep.reshape(B * NHEAD * L, NHEAD * L * C2D).astype(jnp.bfloat16)

    # --- packed parameter slabs (init-time layout prep in a real model) ------
    wslab = jnp.zeros((W_ROWS, W_LANES), jnp.float32)
    wslab = wslab.at[ROW_WQKV:ROW_WQKV + E, 0:3 * D_MODEL].set(
        jnp.concatenate([P["wq"], P["wk"], P["wv"]], axis=1))
    w2d_stk = jnp.einsum("ch,jJ->hjcJ", P["w2d"], jnp.eye(L, dtype=jnp.float32))
    wslab = wslab.at[ROW_W2D:ROW_W2D + NHEAD * L * C2D, 0:L].set(
        w2d_stk.reshape(NHEAD * L * C2D, L))
    wslab = wslab.at[ROW_WL1:ROW_WL1 + E, 0:DIM_FF].set(P["wl1"])
    wslab = wslab.at[ROW_WL2:ROW_WL2 + DIM_FF, 0:E].set(P["wl2"])
    wslab = wslab.at[ROW_WO:ROW_WO + D_MODEL, 0:E].set(P["wo"])
    wslab = wslab.astype(jnp.bfloat16)

    vslab = jnp.zeros((8, 32), jnp.float32)
    vslab = vslab.at[0, 0:E].set(P["bo"].reshape(-1))
    vslab = vslab.at[1, 0:E].set(P["g1"].reshape(-1))
    vslab = vslab.at[2, 0:E].set(P["be1"].reshape(-1))
    vslab = vslab.at[3, 0:DIM_FF].set(P["bl1"].reshape(-1))
    vslab = vslab.at[4, 0:E].set(P["bl2"].reshape(-1))
    vslab = vslab.at[5, 0:E].set(P["g2"].reshape(-1))
    vslab = vslab.at[6, 0:E].set(P["be2"].reshape(-1))
    # (b2d is intentionally not packed: it is constant along the softmax axis
    #  and cancels exactly in softmax.)

    operands = (s2, p_rep, wslab, vslab)
    full2d = lambda i: (0, 0)

    # TODO(synk): when stacking blocks / growing batch, add a leading
    # "parallel" grid axis (indexing packed per-layer weight slabs) so v7x can
    # shard across both TensorCores and launch/DMA overhead is amortized.
    out = pl.pallas_call(
        idpgan_block_kernel,
        out_shape=jax.ShapeDtypeStruct((B * L, E), jnp.float32),
        grid=(1,),                      # single step: whole problem fits in vregs
        in_specs=[pl.BlockSpec(x.shape, full2d) for x in operands],
        out_specs=pl.BlockSpec((B * L, E), full2d),
        compiler_params=pltpu.CompilerParams(dimension_semantics=("arbitrary",)),
    )(*operands)
    return jnp.transpose(out.reshape(B, L, E), (1, 0, 2))


def reference_block(s, p, P):
    """Pure-JAX transcription of the PyTorch forward (eval mode, dropout = identity)."""
    L, B, E = s.shape
    q = jnp.swapaxes((s @ P["wq"]).reshape(L, B * NHEAD, HEAD_DIM), 0, 1) * W_T
    k = jnp.swapaxes((s @ P["wk"]).reshape(L, B * NHEAD, HEAD_DIM), 0, 1)
    v = jnp.swapaxes((s @ P["wv"]).reshape(L, B * NHEAD, HEAD_DIM), 0, 1)
    dp = jnp.einsum("nlh,nmh->nlm", q, k)
    pm = p @ P["w2d"] + P["b2d"]                               # (B, L, L, NHEAD)
    pm = jnp.transpose(pm, (0, 3, 1, 2)).reshape(B * NHEAD, L, L)
    attn = jax.nn.softmax(dp + pm, axis=-1)
    sn = jnp.einsum("nlm,nmh->nlh", attn, v)
    sn = jnp.swapaxes(sn, 0, 1).reshape(L, B, D_MODEL)
    s2 = sn @ P["wo"] + P["bo"]

    def ln(x, g, b):
        mu = x.mean(-1, keepdims=True)
        var = ((x - mu) ** 2).mean(-1, keepdims=True)
        return (x - mu) / jnp.sqrt(var + LN_EPS) * g + b

    s1 = ln(s + s2, P["g1"], P["be1"])
    ff = jnp.maximum(s1 @ P["wl1"] + P["bl1"], 0.0) @ P["wl2"] + P["bl2"]
    return ln(s1 + ff, P["g2"], P["be2"])


if __name__ == "__main__":
    key = jax.random.PRNGKey(0)
    ks = jax.random.split(key, 16)
    nrm = lambda k, shp, sc=0.1: (jax.random.normal(k, shp, jnp.float32) * sc)

    # Weights stored transposed vs torch (in_dim, out_dim) so the kernel right-multiplies.
    P = {
        "wq":  nrm(ks[0], (EMBED_DIM, D_MODEL)),
        "wk":  nrm(ks[1], (EMBED_DIM, D_MODEL)),
        "wv":  nrm(ks[2], (EMBED_DIM, D_MODEL)),
        "wo":  nrm(ks[3], (D_MODEL, EMBED_DIM)),
        "bo":  nrm(ks[4], (1, EMBED_DIM)),
        "w2d": nrm(ks[5], (EMBED_DIM2D, NHEAD)),
        "b2d": nrm(ks[6], (1, NHEAD)),
        "g1":  jnp.ones((1, EMBED_DIM), jnp.float32),
        "be1": jnp.zeros((1, EMBED_DIM), jnp.float32),
        "wl1": nrm(ks[7], (EMBED_DIM, DIM_FF)),
        "bl1": nrm(ks[8], (1, DIM_FF)),
        "wl2": nrm(ks[9], (DIM_FF, EMBED_DIM)),
        "bl2": nrm(ks[10], (1, EMBED_DIM)),
        "g2":  jnp.ones((1, EMBED_DIM), jnp.float32),
        "be2": jnp.zeros((1, EMBED_DIM), jnp.float32),
    }

    s = jax.random.normal(ks[11], (SEQ_L, BATCH, EMBED_DIM), jnp.float32)
    p = jax.random.normal(ks[12], (BATCH, SEQ_L, SEQ_L, EMBED_DIM2D), jnp.float32)

    out = jax.block_until_ready(idpgan_block(s, p, P))
    ref = reference_block(s, p, P)

    assert out.shape == (SEQ_L, BATCH, EMBED_DIM), out.shape
    assert bool(jnp.all(jnp.isfinite(out)))
    assert bool(jnp.allclose(out, ref, rtol=1e-2, atol=1e-2)), "kernel/reference mismatch"
    print("KERNEL_OK")
</pallas_src>

<mosaic_0001>
module attributes {stable_mosaic.version = 11 : i64} {
  func.func @idpgan_block_kernel(%arg0: i32, %arg1: memref<16x16xf32, #tpu.memory_space<vmem>>, %arg2: memref<64x128xbf16, #tpu.memory_space<vmem>>, %arg3: memref<224x128xbf16, #tpu.memory_space<vmem>>, %arg4: memref<8x32xf32, #tpu.memory_space<vmem>>, %arg5: memref<16x16xf32, #tpu.memory_space<vmem>>) attributes {dimension_semantics = [#tpu.dimension_semantics<arbitrary>], iteration_bounds = array<i64: 1>, scalar_prefetch = 0 : i64, scratch_operands = 0 : i64, tpu.core_type = #tpu.core_type<tc>, window_params = [{pipeline_mode = #tpu.pipeline_mode<synchronous>, transform_indices = @transform_0, window_bounds = array<i64: 16, 16>}, {pipeline_mode = #tpu.pipeline_mode<synchronous>, transform_indices = @transform_1, window_bounds = array<i64: 64, 128>}, {pipeline_mode = #tpu.pipeline_mode<synchronous>, transform_indices = @transform_2, window_bounds = array<i64: 224, 128>}, {pipeline_mode = #tpu.pipeline_mode<synchronous>, transform_indices = @transform_3, window_bounds = array<i64: 8, 32>}, {pipeline_mode = #tpu.pipeline_mode<synchronous>, transform_indices = @transform_4, window_bounds = array<i64: 16, 16>}]} {
    %c0 = arith.constant 0 : index
    %c0_0 = arith.constant 0 : index
    %0 = vector.load %arg1[%c0, %c0_0] : memref<16x16xf32, #tpu.memory_space<vmem>>, vector<16x16xf32>
    %c0_1 = arith.constant 0 : index
    %c0_2 = arith.constant 0 : index
    %1 = vector.load %arg3[%c0_1, %c0_2] : memref<224x128xbf16, #tpu.memory_space<vmem>>, vector<16x96xbf16>
    %c16 = arith.constant 16 : index
    %c0_3 = arith.constant 0 : index
    %2 = vector.load %arg3[%c16, %c0_3] : memref<224x128xbf16, #tpu.memory_space<vmem>>, vector<128x8xbf16>
    %c144 = arith.constant 144 : index
    %c0_4 = arith.constant 0 : index
    %3 = vector.load %arg3[%c144, %c0_4] : memref<224x128xbf16, #tpu.memory_space<vmem>>, vector<16x32xbf16>
    %c160 = arith.constant 160 : index
    %c0_5 = arith.constant 0 : index
    %4 = vector.load %arg3[%c160, %c0_5] : memref<224x128xbf16, #tpu.memory_space<vmem>>, vector<32x16xbf16>
    %c192 = arith.constant 192 : index
    %c0_6 = arith.constant 0 : index
    %5 = vector.load %arg3[%c192, %c0_6] : memref<224x128xbf16, #tpu.memory_space<vmem>>, vector<32x16xbf16>
    %c0_7 = arith.constant 0 : index
    %c0_8 = arith.constant 0 : index
    %6 = vector.load %arg4[%c0_7, %c0_8] : memref<8x32xf32, #tpu.memory_space<vmem>>, vector<1x16xf32>
    %c1 = arith.constant 1 : index
    %c0_9 = arith.constant 0 : index
    %7 = vector.load %arg4[%c1, %c0_9] : memref<8x32xf32, #tpu.memory_space<vmem>>, vector<1x16xf32>
    %c2 = arith.constant 2 : index
    %c0_10 = arith.constant 0 : index
    %8 = vector.load %arg4[%c2, %c0_10] : memref<8x32xf32, #tpu.memory_space<vmem>>, vector<1x16xf32>
    %c3 = arith.constant 3 : index
    %c0_11 = arith.constant 0 : index
    %9 = vector.load %arg4[%c3, %c0_11] : memref<8x32xf32, #tpu.memory_space<vmem>>, vector<1x32xf32>
    %c4 = arith.constant 4 : index
    %c0_12 = arith.constant 0 : index
    %10 = vector.load %arg4[%c4, %c0_12] : memref<8x32xf32, #tpu.memory_space<vmem>>, vector<1x16xf32>
    %c5 = arith.constant 5 : index
    %c0_13 = arith.constant 0 : index
    %11 = vector.load %arg4[%c5, %c0_13] : memref<8x32xf32, #tpu.memory_space<vmem>>, vector<1x16xf32>
    %c6 = arith.constant 6 : index
    %c0_14 = arith.constant 0 : index
    %12 = vector.load %arg4[%c6, %c0_14] : memref<8x32xf32, #tpu.memory_space<vmem>>, vector<1x16xf32>
    %13 = arith.truncf %0 : vector<16x16xf32> to vector<16x16xbf16>
    %cst = arith.constant dense<0.000000e+00> : vector<16x96xf32>
    %14 = tpu.matmul %13, %1, %cst {dimension_numbers = #tpu.dot_dimension_numbers<[1], [0], [0], [1], [0, 0, 1, 1], [], []>} : vector<16x16xbf16>, vector<16x96xbf16>, vector<16x96xf32> -> vector<16x96xf32>
    %15 = vector.extract_strided_slice %14 {offsets = [0, 0], sizes = [16, 32], strides = [1, 1]} : vector<16x96xf32> to vector<16x32xf32>
    %cst_15 = arith.constant 0.176776692 : f32
    %16 = vector.broadcast %cst_15 : f32 to vector<16x32xf32>
    %17 = arith.mulf %15, %16 : vector<16x32xf32>
    %18 = vector.extract_strided_slice %14 {offsets = [0, 32], sizes = [16, 32], strides = [1, 1]} : vector<16x96xf32> to vector<16x32xf32>
    %19 = vector.extract_strided_slice %14 {offsets = [0, 64], sizes = [16, 32], strides = [1, 1]} : vector<16x96xf32> to vector<16x32xf32>
    %c0_16 = arith.constant 0 : index
    %c0_17 = arith.constant 0 : index
    %20 = vector.load %arg2[%c0_16, %c0_17] : memref<64x128xbf16, #tpu.memory_space<vmem>>, vector<64x128xbf16>
    %cst_18 = arith.constant dense<0.000000e+00> : vector<64x8xf32>
    %21 = tpu.matmul %20, %2, %cst_18 {dimension_numbers = #tpu.dot_dimension_numbers<[1], [0], [0], [1], [0, 0, 1, 1], [], []>} : vector<64x128xbf16>, vector<128x8xbf16>, vector<64x8xf32> -> vector<64x8xf32>
    %22 = vector.extract_strided_slice %17 {offsets = [0, 0], sizes = [8, 8], strides = [1, 1]} : vector<16x32xf32> to vector<8x8xf32>
    %23 = vector.extract_strided_slice %18 {offsets = [0, 0], sizes = [8, 8], strides = [1, 1]} : vector<16x32xf32> to vector<8x8xf32>
    %24 = tpu.transpose %23, [1, 0] : vector<8x8xf32> -> vector<8x8xf32>
    %cst_19 = arith.constant dense<0.000000e+00> : vector<8x8xf32>
    %25 = tpu.matmul %22, %24, %cst_19 {dimension_numbers = #tpu.dot_dimension_numbers<[1], [0], [0], [1], [0, 0, 1, 1], [], []>} : vector<8x8xf32>, vector<8x8xf32>, vector<8x8xf32> -> vector<8x8xf32>
    %26 = vector.extract_strided_slice %17 {offsets = [0, 8], sizes = [8, 8], strides = [1, 1]} : vector<16x32xf32> to vector<8x8xf32>
    %27 = vector.extract_strided_slice %18 {offsets = [0, 8], sizes = [8, 8], strides = [1, 1]} : vector<16x32xf32> to vector<8x8xf32>
    %28 = tpu.transpose %27, [1, 0] : vector<8x8xf32> -> vector<8x8xf32>
    %cst_20 = arith.constant dense<0.000000e+00> : vector<8x8xf32>
    %29 = tpu.matmul %26, %28, %cst_20 {dimension_numbers = #tpu.dot_dimension_numbers<[1], [0], [0], [1], [0, 0, 1, 1], [], []>} : vector<8x8xf32>, vector<8x8xf32>, vector<8x8xf32> -> vector<8x8xf32>
    %30 = vector.extract_strided_slice %17 {offsets = [0, 16], sizes = [8, 8], strides = [1, 1]} : vector<16x32xf32> to vector<8x8xf32>
    %31 = vector.extract_strided_slice %18 {offsets = [0, 16], sizes = [8, 8], strides = [1, 1]} : vector<16x32xf32> to vector<8x8xf32>
    %32 = tpu.transpose %31, [1, 0] : vector<8x8xf32> -> vector<8x8xf32>
    %cst_21 = arith.constant dense<0.000000e+00> : vector<8x8xf32>
    %33 = tpu.matmul %30, %32, %cst_21 {dimension_numbers = #tpu.dot_dimension_numbers<[1], [0], [0], [1], [0, 0, 1, 1], [], []>} : vector<8x8xf32>, vector<8x8xf32>, vector<8x8xf32> -> vector<8x8xf32>
    %34 = vector.extract_strided_slice %17 {offsets = [0, 24], sizes = [8, 8], strides = [1, 1]} : vector<16x32xf32> to vector<8x8xf32>
    %35 = vector.extract_strided_slice %18 {offsets = [0, 24], sizes = [8, 8], strides = [1, 1]} : vector<16x32xf32> to vector<8x8xf32>
    %36 = tpu.transpose %35, [1, 0] : vector<8x8xf32> -> vector<8x8xf32>
    %cst_22 = arith.constant dense<0.000000e+00> : vector<8x8xf32>
    %37 = tpu.matmul %34, %36, %cst_22 {dimension_numbers = #tpu.dot_dimension_numbers<[1], [0], [0], [1], [0, 0, 1, 1], [], []>} : vector<8x8xf32>, vector<8x8xf32>, vector<8x8xf32> -> vector<8x8xf32>
    %38 = vector.extract_strided_slice %17 {offsets = [8, 0], sizes = [8, 8], strides = [1, 1]} : vector<16x32xf32> to vector<8x8xf32>
    %39 = vector.extract_strided_slice %18 {offsets = [8, 0], sizes = [8, 8], strides = [1, 1]} : vector<16x32xf32> to vector<8x8xf32>
    %40 = tpu.transpose %39, [1, 0] : vector<8x8xf32> -> vector<8x8xf32>
    %cst_23 = arith.constant dense<0.000000e+00> : vector<8x8xf32>
    %41 = tpu.matmul %38, %40, %cst_23 {dimension_numbers = #tpu.dot_dimension_numbers<[1], [0], [0], [1], [0, 0, 1, 1], [], []>} : vector<8x8xf32>, vector<8x8xf32>, vector<8x8xf32> -> vector<8x8xf32>
    %42 = vector.extract_strided_slice %17 {offsets = [8, 8], sizes = [8, 8], strides = [1, 1]} : vector<16x32xf32> to vector<8x8xf32>
    %43 = vector.extract_strided_slice %18 {offsets = [8, 8], sizes = [8, 8], strides = [1, 1]} : vector<16x32xf32> to vector<8x8xf32>
    %44 = tpu.transpose %43, [1, 0] : vector<8x8xf32> -> vector<8x8xf32>
    %cst_24 = arith.constant dense<0.000000e+00> : vector<8x8xf32>
    %45 = tpu.matmul %42, %44, %cst_24 {dimension_numbers = #tpu.dot_dimension_numbers<[1], [0], [0], [1], [0, 0, 1, 1], [], []>} : vector<8x8xf32>, vector<8x8xf32>, vector<8x8xf32> -> vector<8x8xf32>
    %46 = vector.extract_strided_slice %17 {offsets = [8, 16], sizes = [8, 8], strides = [1, 1]} : vector<16x32xf32> to vector<8x8xf32>
    %47 = vector.extract_strided_slice %18 {offsets = [8, 16], sizes = [8, 8], strides = [1, 1]} : vector<16x32xf32> to vector<8x8xf32>
    %48 = tpu.transpose %47, [1, 0] : vector<8x8xf32> -> vector<8x8xf32>
    %cst_25 = arith.constant dense<0.000000e+00> : vector<8x8xf32>
    %49 = tpu.matmul %46, %48, %cst_25 {dimension_numbers = #tpu.dot_dimension_numbers<[1], [0], [0], [1], [0, 0, 1, 1], [], []>} : vector<8x8xf32>, vector<8x8xf32>, vector<8x8xf32> -> vector<8x8xf32>
    %50 = vector.extract_strided_slice %17 {offsets = [8, 24], sizes = [8, 8], strides = [1, 1]} : vector<16x32xf32> to vector<8x8xf32>
    %51 = vector.extract_strided_slice %18 {offsets = [8, 24], sizes = [8, 8], strides = [1, 1]} : vector<16x32xf32> to vector<8x8xf32>
    %52 = tpu.transpose %51, [1, 0] : vector<8x8xf32> -> vector<8x8xf32>
    %cst_26 = arith.constant dense<0.000000e+00> : vector<8x8xf32>
    %53 = tpu.matmul %50, %52, %cst_26 {dimension_numbers = #tpu.dot_dimension_numbers<[1], [0], [0], [1], [0, 0, 1, 1], [], []>} : vector<8x8xf32>, vector<8x8xf32>, vector<8x8xf32> -> vector<8x8xf32>
    %54 = tpu.concatenate %25, %29, %33, %37, %41, %45, %49, %53 in 0 : vector<8x8xf32>, vector<8x8xf32>, vector<8x8xf32>, vector<8x8xf32>, vector<8x8xf32>, vector<8x8xf32>, vector<8x8xf32>, vector<8x8xf32> -> vector<64x8xf32>
    %55 = arith.addf %54, %21 : vector<64x8xf32>
    %cst_27 = arith.constant dense<0xFF800000> : vector<64xf32>
    %56 = vector.multi_reduction <maximumf>, %55, %cst_27 [1] : vector<64x8xf32> to vector<64xf32>
    %57 = vector.shape_cast %56 : vector<64xf32> to vector<64x1xf32>
    %58 = vector.broadcast %57 : vector<64x1xf32> to vector<64x8xf32>
    %59 = arith.subf %55, %58 : vector<64x8xf32>
    %60 = math.exp %59 : vector<64x8xf32>
    %cst_28 = arith.constant dense<0.000000e+00> : vector<64xf32>
    %61 = vector.multi_reduction <add>, %60, %cst_28 [1] : vector<64x8xf32> to vector<64xf32>
    %62 = vector.shape_cast %61 : vector<64xf32> to vector<64x1xf32>
    %63 = tpu.reciprocal %62 {approx = true} : vector<64x1xf32> -> vector<64x1xf32>
    %64 = vector.broadcast %63 : vector<64x1xf32> to vector<64x8xf32>
    %65 = arith.mulf %60, %64 : vector<64x8xf32>
    %66 = vector.extract_strided_slice %65 {offsets = [0, 0], sizes = [8, 8], strides = [1, 1]} : vector<64x8xf32> to vector<8x8xf32>
    %67 = vector.extract_strided_slice %19 {offsets = [0, 0], sizes = [8, 8], strides = [1, 1]} : vector<16x32xf32> to vector<8x8xf32>
    %cst_29 = arith.constant dense<0.000000e+00> : vector<8x8xf32>
    %68 = tpu.matmul %66, %67, %cst_29 {dimension_numbers = #tpu.dot_dimension_numbers<[1], [0], [0], [1], [0, 0, 1, 1], [], []>} : vector<8x8xf32>, vector<8x8xf32>, vector<8x8xf32> -> vector<8x8xf32>
    %69 = vector.extract_strided_slice %65 {offsets = [8, 0], sizes = [8, 8], strides = [1, 1]} : vector<64x8xf32> to vector<8x8xf32>
    %70 = vector.extract_strided_slice %19 {offsets = [0, 8], sizes = [8, 8], strides = [1, 1]} : vector<16x32xf32> to vector<8x8xf32>
    %cst_30 = arith.constant dense<0.000000e+00> : vector<8x8xf32>
    %71 = tpu.matmul %69, %70, %cst_30 {dimension_numbers = #tpu.dot_dimension_numbers<[1], [0], [0], [1], [0, 0, 1, 1], [], []>} : vector<8x8xf32>, vector<8x8xf32>, vector<8x8xf32> -> vector<8x8xf32>
    %72 = vector.extract_strided_slice %65 {offsets = [16, 0], sizes = [8, 8], strides = [1, 1]} : vector<64x8xf32> to vector<8x8xf32>
    %73 = vector.extract_strided_slice %19 {offsets = [0, 16], sizes = [8, 8], strides = [1, 1]} : vector<16x32xf32> to vector<8x8xf32>
    %cst_31 = arith.constant dense<0.000000e+00> : vector<8x8xf32>
    %74 = tpu.matmul %72, %73, %cst_31 {dimension_numbers = #tpu.dot_dimension_numbers<[1], [0], [0], [1], [0, 0, 1, 1], [], []>} : vector<8x8xf32>, vector<8x8xf32>, vector<8x8xf32> -> vector<8x8xf32>
    %75 = vector.extract_strided_slice %65 {offsets = [24, 0], sizes = [8, 8], strides = [1, 1]} : vector<64x8xf32> to vector<8x8xf32>
    %76 = vector.extract_strided_slice %19 {offsets = [0, 24], sizes = [8, 8], strides = [1, 1]} : vector<16x32xf32> to vector<8x8xf32>
    %cst_32 = arith.constant dense<0.000000e+00> : vector<8x8xf32>
    %77 = tpu.matmul %75, %76, %cst_32 {dimension_numbers = #tpu.dot_dimension_numbers<[1], [0], [0], [1], [0, 0, 1, 1], [], []>} : vector<8x8xf32>, vector<8x8xf32>, vector<8x8xf32> -> vector<8x8xf32>
    %78 = tpu.concatenate %68, %71, %74, %77 in 1 : vector<8x8xf32>, vector<8x8xf32>, vector<8x8xf32>, vector<8x8xf32> -> vector<8x32xf32>
    %79 = vector.extract_strided_slice %65 {offsets = [32, 0], sizes = [8, 8], strides = [1, 1]} : vector<64x8xf32> to vector<8x8xf32>
    %80 = vector.extract_strided_slice %19 {offsets = [8, 0], sizes = [8, 8], strides = [1, 1]} : vector<16x32xf32> to vector<8x8xf32>
    %cst_33 = arith.constant dense<0.000000e+00> : vector<8x8xf32>
    %81 = tpu.matmul %79, %80, %cst_33 {dimension_numbers = #tpu.dot_dimension_numbers<[1], [0], [0], [1], [0, 0, 1, 1], [], []>} : vector<8x8xf32>, vector<8x8xf32>, vector<8x8xf32> -> vector<8x8xf32>
    %82 = vector.extract_strided_slice %65 {offsets = [40, 0], sizes = [8, 8], strides = [1, 1]} : vector<64x8xf32> to vector<8x8xf32>
    %83 = vector.extract_strided_slice %19 {offsets = [8, 8], sizes = [8, 8], strides = [1, 1]} : vector<16x32xf32> to vector<8x8xf32>
    %cst_34 = arith.constant dense<0.000000e+00> : vector<8x8xf32>
    %84 = tpu.matmul %82, %83, %cst_34 {dimension_numbers = #tpu.dot_dimension_numbers<[1], [0], [0], [1], [0, 0, 1, 1], [], []>} : vector<8x8xf32>, vector<8x8xf32>, vector<8x8xf32> -> vector<8x8xf32>
    %85 = vector.extract_strided_slice %65 {offsets = [48, 0], sizes = [8, 8], strides = [1, 1]} : vector<64x8xf32> to vector<8x8xf32>
    %86 = vector.extract_strided_slice %19 {offsets = [8, 16], sizes = [8, 8], strides = [1, 1]} : vector<16x32xf32> to vector<8x8xf32>
    %cst_35 = arith.constant dense<0.000000e+00> : vector<8x8xf32>
    %87 = tpu.matmul %85, %86, %cst_35 {dimension_numbers = #tpu.dot_dimension_numbers<[1], [0], [0], [1], [0, 0, 1, 1], [], []>} : vector<8x8xf32>, vector<8x8xf32>, vector<8x8xf32> -> vector<8x8xf32>
    %88 = vector.extract_strided_slice %65 {offsets = [56, 0], sizes = [8, 8], strides = [1, 1]} : vector<64x8xf32> to vector<8x8xf32>
    %89 = vector.extract_strided_slice %19 {offsets = [8, 24], sizes = [8, 8], strides = [1, 1]} : vector<16x32xf32> to vector<8x8xf32>
    %cst_36 = arith.constant dense<0.000000e+00> : vector<8x8xf32>
    %90 = tpu.matmul %88, %89, %cst_36 {dimension_numbers = #tpu.dot_dimension_numbers<[1], [0], [0], [1], [0, 0, 1, 1], [], []>} : vector<8x8xf32>, vector<8x8xf32>, vector<8x8xf32> -> vector<8x8xf32>
    %91 = tpu.concatenate %81, %84, %87, %90 in 1 : vector<8x8xf32>, vector<8x8xf32>, vector<8x8xf32>, vector<8x8xf32> -> vector<8x32xf32>
    %92 = tpu.concatenate %78, %91 in 0 : vector<8x32xf32>, vector<8x32xf32> -> vector<16x32xf32>
    %93 = arith.truncf %92 : vector<16x32xf32> to vector<16x32xbf16>
    %cst_37 = arith.constant dense<0.000000e+00> : vector<16x16xf32>
    %94 = tpu.matmul %93, %5, %cst_37 {dimension_numbers = #tpu.dot_dimension_numbers<[1], [0], [0], [1], [0, 0, 1, 1], [], []>} : vector<16x32xbf16>, vector<32x16xbf16>, vector<16x16xf32> -> vector<16x16xf32>
    %95 = vector.broadcast %6 : vector<1x16xf32> to vector<16x16xf32>
    %96 = arith.addf %94, %95 : vector<16x16xf32>
    %97 = arith.addf %0, %96 : vector<16x16xf32>
    %cst_38 = arith.constant dense<0.000000e+00> : vector<16xf32>
    %98 = vector.multi_reduction <add>, %97, %cst_38 [1] : vector<16x16xf32> to vector<16xf32>
    %99 = vector.shape_cast %98 : vector<16xf32> to vector<16x1xf32>
    %cst_39 = arith.constant 1.600000e+01 : f32
    %100 = vector.broadcast %cst_39 : f32 to vector<16x1xf32>
    %101 = arith.divf %99, %100 : vector<16x1xf32>
    %102 = vector.broadcast %101 : vector<16x1xf32> to vector<16x16xf32>
    %103 = arith.subf %97, %102 : vector<16x16xf32>
    %104 = arith.mulf %103, %103 : vector<16x16xf32>
    %cst_40 = arith.constant dense<0.000000e+00> : vector<16xf32>
    %105 = vector.multi_reduction <add>, %104, %cst_40 [1] : vector<16x16xf32> to vector<16xf32>
    %106 = vector.shape_cast %105 : vector<16xf32> to vector<16x1xf32>
    %cst_41 = arith.constant 1.600000e+01 : f32
    %107 = vector.broadcast %cst_41 : f32 to vector<16x1xf32>
    %108 = arith.divf %106, %107 : vector<16x1xf32>
    %109 = vector.broadcast %101 : vector<16x1xf32> to vector<16x16xf32>
    %110 = arith.subf %97, %109 : vector<16x16xf32>
    %cst_42 = arith.constant 9.99999974E-6 : f32
    %111 = vector.broadcast %cst_42 : f32 to vector<16x1xf32>
    %112 = arith.addf %108, %111 : vector<16x1xf32>
    %113 = math.rsqrt %112 : vector<16x1xf32>
    %114 = vector.broadcast %113 : vector<16x1xf32> to vector<16x16xf32>
    %115 = arith.mulf %110, %114 : vector<16x16xf32>
    %116 = vector.broadcast %7 : vector<1x16xf32> to vector<16x16xf32>
    %117 = arith.mulf %115, %116 : vector<16x16xf32>
    %118 = vector.broadcast %8 : vector<1x16xf32> to vector<16x16xf32>
    %119 = arith.addf %117, %118 : vector<16x16xf32>
    %120 = arith.truncf %119 : vector<16x16xf32> to vector<16x16xbf16>
    %cst_43 = arith.constant dense<0.000000e+00> : vector<16x32xf32>
    %121 = tpu.matmul %120, %3, %cst_43 {dimension_numbers = #tpu.dot_dimension_numbers<[1], [0], [0], [1], [0, 0, 1, 1], [], []>} : vector<16x16xbf16>, vector<16x32xbf16>, vector<16x32xf32> -> vector<16x32xf32>
    %122 = vector.broadcast %9 : vector<1x32xf32> to vector<16x32xf32>
    %123 = arith.addf %121, %122 : vector<16x32xf32>
    %cst_44 = arith.constant 0.000000e+00 : f32
    %124 = vector.broadcast %cst_44 : f32 to vector<16x32xf32>
    %125 = arith.maximumf %123, %124 : vector<16x32xf32>
    %126 = arith.truncf %125 : vector<16x32xf32> to vector<16x32xbf16>
    %cst_45 = arith.constant dense<0.000000e+00> : vector<16x16xf32>
    %127 = tpu.matmul %126, %4, %cst_45 {dimension_numbers = #tpu.dot_dimension_numbers<[1], [0], [0], [1], [0, 0, 1, 1], [], []>} : vector<16x32xbf16>, vector<32x16xbf16>, vector<16x16xf32> -> vector<16x16xf32>
    %128 = vector.broadcast %10 : vector<1x16xf32> to vector<16x16xf32>
    %129 = arith.addf %127, %128 : vector<16x16xf32>
    %130 = arith.addf %119, %129 : vector<16x16xf32>
    %cst_46 = arith.constant dense<0.000000e+00> : vector<16xf32>
    %131 = vector.multi_reduction <add>, %130, %cst_46 [1] : vector<16x16xf32> to vector<16xf32>
    %132 = vector.shape_cast %131 : vector<16xf32> to vector<16x1xf32>
    %cst_47 = arith.constant 1.600000e+01 : f32
    %133 = vector.broadcast %cst_47 : f32 to vector<16x1xf32>
    %134 = arith.divf %132, %133 : vector<16x1xf32>
    %135 = vector.broadcast %134 : vector<16x1xf32> to vector<16x16xf32>
    %136 = arith.subf %130, %135 : vector<16x16xf32>
    %137 = arith.mulf %136, %136 : vector<16x16xf32>
    %cst_48 = arith.constant dense<0.000000e+00> : vector<16xf32>
    %138 = vector.multi_reduction <add>, %137, %cst_48 [1] : vector<16x16xf32> to vector<16xf32>
    %139 = vector.shape_cast %138 : vector<16xf32> to vector<16x1xf32>
    %cst_49 = arith.constant 1.600000e+01 : f32
    %140 = vector.broadcast %cst_49 : f32 to vector<16x1xf32>
    %141 = arith.divf %139, %140 : vector<16x1xf32>
    %142 = vector.broadcast %134 : vector<16x1xf32> to vector<16x16xf32>
    %143 = arith.subf %130, %142 : vector<16x16xf32>
    %cst_50 = arith.constant 9.99999974E-6 : f32
    %144 = vector.broadcast %cst_50 : f32 to vector<16x1xf32>
    %145 = arith.addf %141, %144 : vector<16x1xf32>
    %146 = math.rsqrt %145 : vector<16x1xf32>
    %147 = vector.broadcast %146 : vector<16x1xf32> to vector<16x16xf32>
    %148 = arith.mulf %143, %147 : vector<16x16xf32>
    %149 = vector.broadcast %11 : vector<1x16xf32> to vector<16x16xf32>
    %150 = arith.mulf %148, %149 : vector<16x16xf32>
    %151 = vector.broadcast %12 : vector<1x16xf32> to vector<16x16xf32>
    %152 = arith.addf %150, %151 : vector<16x16xf32>
    %c0_51 = arith.constant 0 : index
    %c0_52 = arith.constant 0 : index
    %153 = vector.load %arg5[%c0_51, %c0_52] : memref<16x16xf32, #tpu.memory_space<vmem>>, vector<16x16xf32>
    tpu.vector_store %arg5[%c0_51, %c0_52], %152 {strides = array<i32>} : memref<16x16xf32, #tpu.memory_space<vmem>>, vector<16x16xf32>,
    return
  }
  func.func @transform_0(%arg0: i32) -> (i32, i32) {
    %c0_i32 = arith.constant 0 : i32
    %c0_i32_0 = arith.constant 0 : i32
    %c0_i32_1 = arith.constant 0 : i32
    return %c0_i32, %c0_i32_0 : i32, i32
  }
  func.func @transform_1(%arg0: i32) -> (i32, i32) {
    %c0_i32 = arith.constant 0 : i32
    %c0_i32_0 = arith.constant 0 : i32
    %c0_i32_1 = arith.constant 0 : i32
    return %c0_i32, %c0_i32_0 : i32, i32
  }
  func.func @transform_2(%arg0: i32) -> (i32, i32) {
    %c0_i32 = arith.constant 0 : i32
    %c0_i32_0 = arith.constant 0 : i32
    %c0_i32_1 = arith.constant 0 : i32
    return %c0_i32, %c0_i32_0 : i32, i32
  }
  func.func @transform_3(%arg0: i32) -> (i32, i32) {
    %c0_i32 = arith.constant 0 : i32
    %c0_i32_0 = arith.constant 0 : i32
    %c0_i32_1 = arith.constant 0 : i32
    return %c0_i32, %c0_i32_0 : i32, i32
  }
  func.func @transform_4(%arg0: i32) -> (i32, i32) {
    %c0_i32 = arith.constant 0 : i32
    %c0_i32_0 = arith.constant 0 : i32
    %c0_i32_1 = arith.constant 0 : i32
    return %c0_i32, %c0_i32_0 : i32, i32
  }
}

</mosaic_0001>

<llo_original>
// kernel: tpu_custom_call.1
$region0: #{tpu_custom_call.1}
  #allocation0 [shape = 'u32[]', space=smem, size = 0x4, offset = 0x4, fixed_abs, tag = 'smem constant byte address 0x4 - core index']
  #allocation1 [shape = 'u32[144,128]{1,0:T(1,128)}', space=vmem, size = 0x12000, scoped, tag = 'internal scratch']
  %s0 = inlined_call_operand.hbm [shape: f32[16,16], index: 0, kind: input, shape index: {}]
  %s1 = inlined_call_operand.hbm [shape: bf16[64,128], index: 1, kind: input, shape index: {}]
  %s2 = inlined_call_operand.hbm [shape: bf16[224,128], index: 2, kind: input, shape index: {}]
  %s3 = inlined_call_operand.vmem [shape: f32[8,32], index: 3, kind: input, shape index: {}]
  %s4 = inlined_call_operand.hbm [shape: f32[16,16], index: 4, kind: output, shape index: {}]
  %s5 = sld [smem:[#allocation0]]
  $region38: #{tpu_custom_call.1} parent=0
    _
  %s7 = ssub.s32 1, %s5
  %s8 = scalar_select 0, %s7, %s5
  $region1: #{tpu_custom_call.1} parent=0
    #allocation2 [shape = 'u8[8192]{0}', space=vmem, size = 0x2000, scoped, tag = 'input window, operand 0, single buffered']
    #allocation3 [shape = 's32[1]{0}', space=sflag, size = 0x4, scoped, tag = 'scoped memory for tpu_custom_call.1']
    #allocation4 [shape = 's32[1]{0}', space=sflag, size = 0x4, scoped, tag = 'scoped memory for tpu_custom_call.1']
    #allocation5 [shape = 'u8[16384]{0}', space=vmem, size = 0x4000, scoped, tag = 'input window, operand 1, single buffered']
    #allocation6 [shape = 's32[1]{0}', space=sflag, size = 0x4, scoped, tag = 'scoped memory for tpu_custom_call.1']
    #allocation7 [shape = 'u8[57344]{0}', space=vmem, size = 0xe000, scoped, tag = 'input window, operand 2, single buffered']
    #allocation8 [shape = 'u8[8192]{0}', space=vmem, size = 0x2000, scoped, tag = 'output window, operand 0, single buffered']
    %9 = vsyncpa [#allocation3], 0
    %10 = vsyncpa [#allocation6], 0
    %11 = vsyncpa [#allocation4], 0
    // Predicated region
    $region2: #{tpu_custom_call.1} parent=1 // pred_check
      _
    $region3: #{tpu_custom_call.1} parent=1 // pred_check_branch
      %13 = sbr.rel (0) target = $region5
    $region4: #{tpu_custom_call.1} parent=1 // pred_region
      %s15 = ssub.s32 256, 256
      %16 = vsyncadd [#allocation3], %s15
      %s17 = sshll.u32 [#allocation2], 4
      %s18 = int_to_ptr.vmem [resolvable:$true] %s17
      %23 = dma.hbm_to_vmem [thread:$0]  %s0, 256, %s18, [#allocation3], 128, 128, 8
    $region5: #{tpu_custom_call.1} parent=1 // pred_fallthru
      _
    // Predicated region
    $region6: #{tpu_custom_call.1} parent=1 // pred_check
      _
    $region7: #{tpu_custom_call.1} parent=1 // pred_check_branch
      %25 = sbr.rel (0) target = $region9
    $region8: #{tpu_custom_call.1} parent=1 // pred_region
      %s27 = ssub.s32 512, 512
      %28 = vsyncadd [#allocation6], %s27
      %s29 = sshll.u32 [#allocation5], 4
      %s30 = int_to_ptr.vmem [resolvable:$true] %s29
      %35 = dma.hbm_to_vmem [thread:$0]  %s1, 512, %s30, [#allocation6], 64, 64, 4
    $region9: #{tpu_custom_call.1} parent=1 // pred_fallthru
      _
    // Predicated region
    $region10: #{tpu_custom_call.1} parent=1 // pred_check
      _
    $region11: #{tpu_custom_call.1} parent=1 // pred_check_branch
      %37 = sbr.rel (0) target = $region13
    $region12: #{tpu_custom_call.1} parent=1 // pred_region
      %s39 = ssub.s32 1792, 1792
      %40 = vsyncadd [#allocation6], %s39
      %s41 = sshll.u32 [#allocation7], 4
      %s42 = int_to_ptr.vmem [resolvable:$true] %s41
      %47 = dma.hbm_to_vmem [thread:$0]  %s2, 1792, %s42, [#allocation6], 64, 64, 4
    $region13: #{tpu_custom_call.1} parent=1 // pred_fallthru
      _
    // Predicated region
    $region14: #{tpu_custom_call.1} parent=1 // pred_check
      _
    $region15: #{tpu_custom_call.1} parent=1 // pred_check_branch
      %49 = sbr.rel (0) target = $region17
    $region16: #{tpu_custom_call.1} parent=1 // pred_region
      _
    $region17: #{tpu_custom_call.1} parent=1 // pred_fallthru
      _
    // Predicated region
    $region18: #{tpu_custom_call.1} parent=1 // pred_check
      _
    $region19: #{tpu_custom_call.1} parent=1 // pred_check_branch
      %51 = sbr.rel (0) target = $region21
    $region20: #{tpu_custom_call.1} parent=1 // pred_region
      %52 = dma.done [#allocation3], 256
    $region21: #{tpu_custom_call.1} parent=1 // pred_fallthru
      _
    // Predicated region
    $region22: #{tpu_custom_call.1} parent=1 // pred_check
      _
    $region23: #{tpu_custom_call.1} parent=1 // pred_check_branch
      %54 = sbr.rel (0) target = $region25
    $region24: #{tpu_custom_call.1} parent=1 // pred_region
      %55 = dma.done [#allocation6], 512
    $region25: #{tpu_custom_call.1} parent=1 // pred_fallthru
      _
    // Predicated region
    $region26: #{tpu_custom_call.1} parent=1 // pred_check
      _
    $region27: #{tpu_custom_call.1} parent=1 // pred_check_branch
      %57 = sbr.rel (0) target = $region29
    $region28: #{tpu_custom_call.1} parent=1 // pred_region
      %58 = dma.done [#allocation6], 1792
    $region29: #{tpu_custom_call.1} parent=1 // pred_fallthru
      _
    %v60 = vld [vmem:[#allocation2] sm:$0xff]
    %v61 = vld [vmem:[#allocation2 + $0x8] sm:$0xff]
    %v62 = vld [vmem:[#allocation7] sm:$0xf]
    %v63 = vld [vmem:[#allocation7 + $0x4] sm:$0xf]
    %v64 = vld [vmem:[#allocation7 + $0x8] sm:$0xf]
    %v65 = vld [vmem:[#allocation7 + $0xc] sm:$0xf]
    %v66 = vld [vmem:[#allocation7 + $0x10] sm:$0xf]
    %v67 = vld [vmem:[#allocation7 + $0x14] sm:$0xf]
    %v68 = vld [vmem:[#allocation7 + $0x18] sm:$0xf]
    %v69 = vld [vmem:[#allocation7 + $0x1c] sm:$0xf]
    %v70 = vld [vmem:[#allocation7 + $0x20] sm:$0xf]
    %v71 = vld [vmem:[#allocation7 + $0x24] sm:$0xf]
    %v72 = vld [vmem:[#allocation7 + $0x28] sm:$0xf]
    %v73 = vld [vmem:[#allocation7 + $0x2c] sm:$0xf]
    %v74 = vld [vmem:[#allocation7 + $0x30] sm:$0xf]
    %v75 = vld [vmem:[#allocation7 + $0x34] sm:$0xf]
    %v76 = vld [vmem:[#allocation7 + $0x38] sm:$0xf]
    %v77 = vld [vmem:[#allocation7 + $0x3c] sm:$0xf]
    %v78 = vld [vmem:[#allocation7 + $0x40] sm:$0xf]
    %v79 = vld [vmem:[#allocation7 + $0x44] sm:$0xf]
    %v80 = vld [vmem:[#allocation7 + $0x48] sm:$0xf]
    %v81 = vld [vmem:[#allocation7 + $0x4c] sm:$0xf]
    %v82 = vld [vmem:[#allocation7 + $0x50] sm:$0xf]
    %v83 = vld [vmem:[#allocation7 + $0x54] sm:$0xf]
    %v84 = vld [vmem:[#allocation7 + $0x58] sm:$0xf]
    %v85 = vld [vmem:[#allocation7 + $0x5c] sm:$0xf]
    %v86 = vld [vmem:[#allocation7 + $0x60] sm:$0xf]
    %v87 = vld [vmem:[#allocation7 + $0x64] sm:$0xf]
    %v88 = vld [vmem:[#allocation7 + $0x68] sm:$0xf]
    %v89 = vld [vmem:[#allocation7 + $0x6c] sm:$0xf]
    %v90 = vld [vmem:[%s3] sm:$0x1]
    %v91 = vld [vmem:[%s3 + $0x1] sm:$0x1]
    %v92 = vld [vmem:[%s3 + $0x2] sm:$0x1]
    %v93 = vld [vmem:[%s3 + $0x3] sm:$0x1]
    %v94 = vld [vmem:[%s3 + $0x4] sm:$0x1]
    %v95 = vld [vmem:[%s3 + $0x5] sm:$0x1]
    %v96 = vld [vmem:[%s3 + $0x6] sm:$0x1]
    %v97 = vpack.c.bf16 %v61, %v60
    %v100 = vunpack.c.l.b16 %v62
    %v101 = vunpack.c.l.b16 %v63
    %v102 = vpack.c.b16 %v101, %v100
    %vm104 = vcmask 130048
    %v106 = vsel %vm104, %v97, 0
    %108 = vmatprep.subr.bf16.mxu0 0
    %109 = vmatpush1.bf16.msra.mxu0 %v102
    %110 = vmatprep.subr.bf16.mxu0 0
    %111 = vmatpush1.bf16.msra.mxu0 0
    %112 = vmatprep.subr.bf16.mxu0 0
    %113 = vmatpush1.bf16.msra.mxu0 0
    %114 = vmatprep.subr.bf16.mxu0 0
    %115 = vmatpush1.bf16.msra.mxu0 0
    %116 = vmatprep.subr.bf16.mxu0 0
    %117 = vmatpush1.bf16.msra.mxu0 0
    %118 = vmatprep.subr.bf16.mxu0 0
    %119 = vmatpush1.bf16.msra.mxu0 0
    %120 = vmatprep.subr.bf16.mxu0 0
    %121 = vmatpush1.bf16.msra.mxu0 0
    %122 = vmatprep.subr.bf16.mxu0 0
    %123 = vmatpush1.bf16.msra.mxu0 0
    %124 = vmatprep.subr.bf16.mxu0 0
    %125 = vmatpush1.bf16.msra.mxu0 0
    %126 = vmatprep.subr.bf16.mxu0 0
    %127 = vmatpush1.bf16.msra.mxu0 0
    %128 = vmatprep.subr.bf16.mxu0 0
    %129 = vmatpush1.bf16.msra.mxu0 0
    %130 = vmatprep.subr.bf16.mxu0 0
    %131 = vmatpush1.bf16.msra.mxu0 0
    %132 = vmatprep.subr.bf16.mxu0 0
    %133 = vmatpush1.bf16.msra.mxu0 0
    %134 = vmatprep.subr.bf16.mxu0 0
    %135 = vmatpush1.bf16.msra.mxu0 0
    %136 = vmatprep.subr.bf16.mxu0 0
    %137 = vmatpush1.bf16.msra.mxu0 0
    %138 = vmatprep.subr.bf16.mxu0 0
    %139 = vmatpush1.bf16.msra.mxu0 0
    %140 = vmatprep.mubr.bf16.mxu0 0
    %141 = vmatmul.mubr.bf16.gmra.mrb[0].mxu0 %v106
    %v142 = vpop.f32.mrb[0].mxu0
    %v143 = vadd.f32 0.0, %v142
    %v144 = vpop.f32.mrb[0].mxu0
    %v145 = vpop.f32.mrb[0].mxu0
    %v146 = vadd.f32 0.0, %v145
    %v147 = vpop.f32.mrb[0].mxu0
    %148 = vdwg.mxu0
    %v149 = vmul.f32 %v143, 0.17677669
    %v150 = vmul.f32 %v146, 0.17677669
    %v151 = vld [vmem:[#allocation5] sm:$0xf]
    %v152 = vld [vmem:[#allocation5 + $0x4] sm:$0xf]
    %v153 = vld [vmem:[#allocation5 + $0x8] sm:$0xf]
    %v154 = vld [vmem:[#allocation5 + $0xc] sm:$0xf]
    %v155 = vld [vmem:[#allocation5 + $0x10] sm:$0xf]
    %v156 = vld [vmem:[#allocation5 + $0x14] sm:$0xf]
    %v157 = vld [vmem:[#allocation5 + $0x18] sm:$0xf]
    %v158 = vld [vmem:[#allocation5 + $0x1c] sm:$0xf]
    %v167 = vunpack.c.l.b16 %v151
    %v168 = vunpack.c.l.b16 %v152
    %v169 = vunpack.c.l.b16 %v153
    %v170 = vunpack.c.l.b16 %v154
    %v171 = vunpack.c.l.b16 %v155
    %v172 = vunpack.c.l.b16 %v156
    %v173 = vunpack.c.l.b16 %v157
    %v174 = vunpack.c.l.b16 %v158
    %v175 = vpack.c.b16 %v168, %v167
    %v176 = vpack.c.b16 %v170, %v169
    %v177 = vpack.c.b16 %v172, %v171
    %v178 = vpack.c.b16 %v174, %v173
    %v199 = vunpack.c.l.b16 %v64
    %v200 = vunpack.c.l.b16 %v65
    %v201 = vunpack.c.l.b16 %v66
    %v202 = vunpack.c.l.b16 %v67
    %v203 = vunpack.c.l.b16 %v68
    %v204 = vunpack.c.l.b16 %v69
    %v205 = vunpack.c.l.b16 %v70
    %v206 = vunpack.c.l.b16 %v71
    %v207 = vunpack.c.l.b16 %v72
    %v208 = vunpack.c.l.b16 %v73
    %v209 = vunpack.c.l.b16 %v74
    %v210 = vunpack.c.l.b16 %v75
    %v211 = vunpack.c.l.b16 %v76
    %v212 = vunpack.c.l.b16 %v77
    %v213 = vunpack.c.l.b16 %v78
    %v214 = vunpack.c.l.b16 %v79
    %v215 = vpack.c.b16 %v200, %v199
    %v216 = vpack.c.b16 %v202, %v201
    %v217 = vpack.c.b16 %v204, %v203
    %v218 = vpack.c.b16 %v206, %v205
    %v219 = vpack.c.b16 %v208, %v207
    %v220 = vpack.c.b16 %v210, %v209
    %v221 = vpack.c.b16 %v212, %v211
    %v222 = vpack.c.b16 %v214, %v213
    %231 = vmatprep.subr.bf16.mxu0 0
    %232 = vmatpush1.bf16.msra.mxu0 %v215
    %233 = vmatprep.subr.bf16.mxu0 0
    %234 = vmatpush1.bf16.msra.mxu0 %v216
    %235 = vmatprep.subr.bf16.mxu0 0
    %236 = vmatpush1.bf16.msra.mxu0 %v217
    %237 = vmatprep.subr.bf16.mxu0 0
    %238 = vmatpush1.bf16.msra.mxu0 %v218
    %239 = vmatprep.subr.bf16.mxu0 0
    %240 = vmatpush1.bf16.msra.mxu0 %v219
    %241 = vmatprep.subr.bf16.mxu0 0
    %242 = vmatpush1.bf16.msra.mxu0 %v220
    %243 = vmatprep.subr.bf16.mxu0 0
    %244 = vmatpush1.bf16.msra.mxu0 %v221
    %245 = vmatprep.subr.bf16.mxu0 0
    %246 = vmatpush1.bf16.msra.mxu0 %v222
    %247 = vmatprep.subr.bf16.mxu0 0
    %248 = vmatpush1.bf16.msra.mxu0 0
    %249 = vmatprep.subr.bf16.mxu0 0
    %250 = vmatpush1.bf16.msra.mxu0 0
    %251 = vmatprep.subr.bf16.mxu0 0
    %252 = vmatpush1.bf16.msra.mxu0 0
    %253 = vmatprep.subr.bf16.mxu0 0
    %254 = vmatpush1.bf16.msra.mxu0 0
    %255 = vmatprep.subr.bf16.mxu0 0
    %256 = vmatpush1.bf16.msra.mxu0 0
    %257 = vmatprep.subr.bf16.mxu0 0
    %258 = vmatpush1.bf16.msra.mxu0 0
    %259 = vmatprep.subr.bf16.mxu0 0
    %260 = vmatpush1.bf16.msra.mxu0 0
    %261 = vmatprep.subr.bf16.mxu0 0
    %262 = vmatpush1.bf16.msra.mxu0 0
    %263 = vmatprep.mubr.bf16.mxu0 0
    %264 = vmatmul.mubr.bf16.gmra.mrb[0].mxu0 %v175
    %v265 = vpop.f32.mrb[0].mxu0
    %v266 = vadd.f32 0.0, %v265
    %v267 = vpop.f32.mrb[0].mxu0
    %v268 = vpop.f32.mrb[0].mxu0
    %v269 = vadd.f32 0.0, %v268
    %v270 = vpop.f32.mrb[0].mxu0
    %271 = vmatprep.mubr.bf16.mxu0 0
    %272 = vmatmul.mubr.bf16.gmra.mrb[0].mxu0 %v176
    %v273 = vpop.f32.mrb[0].mxu0
    %v274 = vadd.f32 0.0, %v273
    %v275 = vpop.f32.mrb[0].mxu0
    %v276 = vpop.f32.mrb[0].mxu0
    %v277 = vadd.f32 0.0, %v276
    %v278 = vpop.f32.mrb[0].mxu0
    %279 = vmatprep.mubr.bf16.mxu0 0
    %280 = vmatmul.mubr.bf16.gmra.mrb[0].mxu0 %v177
    %v281 = vpop.f32.mrb[0].mxu0
    %v282 = vadd.f32 0.0, %v281
    %v283 = vpop.f32.mrb[0].mxu0
    %v284 = vpop.f32.mrb[0].mxu0
    %v285 = vadd.f32 0.0, %v284
    %v286 = vpop.f32.mrb[0].mxu0
    %287 = vmatprep.mubr.bf16.mxu0 0
    %288 = vmatmul.mubr.bf16.gmra.mrb[0].mxu0 %v178
    %v289 = vpop.f32.mrb[0].mxu0
    %v290 = vadd.f32 0.0, %v289
    %v291 = vpop.f32.mrb[0].mxu0
    %v292 = vpop.f32.mrb[0].mxu0
    %v293 = vadd.f32 0.0, %v292
    %v294 = vpop.f32.mrb[0].mxu0
    %295 = vdwg.mxu0
    %297 = vrot.lane.b32.xlu0 %v143, 96
    %v298 = vpop.permute.xlu0 %297
    %vm299 = vcmask 64512
    %v301 = vsel %vm299, %v149, 0
    %v303 = vsel %vm299, %v298, 0
    %305 = vmatprep.subr.mxu0 0.0
    %306 = vmatpush1.xpose.msra.mxu0 %v303
    %307 = vmatprep.subr.mxu0 0.0
    %308 = vmatpush1.xpose.msra.mxu0 0.0
    %309 = vmatprep.subr.mxu0 0.0
    %310 = vmatpush1.xpose.msra.mxu0 0.0
    %311 = vmatprep.subr.mxu0 0.0
    %312 = vmatpush1.xpose.msra.mxu0 0.0
    %313 = vmatprep.subr.mxu0 0.0
    %314 = vmatpush1.xpose.msra.mxu0 0.0
    %315 = vmatprep.subr.mxu0 0.0
    %316 = vmatpush1.xpose.msra.mxu0 0.0
    %317 = vmatprep.subr.mxu0 0.0
    %318 = vmatpush1.xpose.msra.mxu0 0.0
    %319 = vmatprep.subr.mxu0 0.0
    %320 = vmatpush1.xpose.msra.mxu0 0.0
    %321 = vmatprep.subr.mxu0 0.0
    %322 = vmatpush1.xpose.msra.mxu0 0.0
    %323 = vmatprep.subr.mxu0 0.0
    %324 = vmatpush1.xpose.msra.mxu0 0.0
    %325 = vmatprep.subr.mxu0 0.0
    %326 = vmatpush1.xpose.msra.mxu0 0.0
    %327 = vmatprep.subr.mxu0 0.0
    %328 = vmatpush1.xpose.msra.mxu0 0.0
    %329 = vmatprep.subr.mxu0 0.0
    %330 = vmatpush1.xpose.msra.mxu0 0.0
    %331 = vmatprep.subr.mxu0 0.0
    %332 = vmatpush1.xpose.msra.mxu0 0.0
    %333 = vmatprep.subr.mxu0 0.0
    %334 = vmatpush1.xpose.msra.mxu0 0.0
    %335 = vmatprep.subr.mxu0 0.0
    %336 = vmatpush1.xpose.msra.mxu0 0.0
    %337 = vmatprep.subr.mxu0 0.0
    %338 = vmatpush1.xpose.msra.mxu0 0.0
    %339 = vmatprep.subr.mxu0 0.0
    %340 = vmatpush1.xpose.msra.mxu0 0.0
    %341 = vmatprep.subr.mxu0 0.0
    %342 = vmatpush1.xpose.msra.mxu0 0.0
    %343 = vmatprep.subr.mxu0 0.0
    %344 = vmatpush1.xpose.msra.mxu0 0.0
    %345 = vmatprep.subr.mxu0 0.0
    %346 = vmatpush1.xpose.msra.mxu0 0.0
    %347 = vmatprep.subr.mxu0 0.0
    %348 = vmatpush1.xpose.msra.mxu0 0.0
    %349 = vmatprep.subr.mxu0 0.0
    %350 = vmatpush1.xpose.msra.mxu0 0.0
    %351 = vmatprep.subr.mxu0 0.0
    %352 = vmatpush1.xpose.msra.mxu0 0.0
    %353 = vmatprep.subr.mxu0 0.0
    %354 = vmatpush1.xpose.msra.mxu0 0.0
    %355 = vmatprep.subr.mxu0 0.0
    %356 = vmatpush1.xpose.msra.mxu0 0.0
    %357 = vmatprep.subr.mxu0 0.0
    %358 = vmatpush1.xpose.msra.mxu0 0.0
    %359 = vmatprep.subr.mxu0 0.0
    %360 = vmatpush1.xpose.msra.mxu0 0.0
    %361 = vmatprep.subr.mxu0 0.0
    %362 = vmatpush1.xpose.msra.mxu0 0.0
    %363 = vmatprep.subr.mxu0 0.0
    %364 = vmatpush1.xpose.msra.mxu0 0.0
    %365 = vmatprep.subr.mxu0 0.0
    %366 = vmatpush1.xpose.msra.mxu0 0.0
    %367 = vmatprep.subr.mxu0 0.0
    %368 = vmatpush1.xpose.msra.mxu0 0.0
    %369 = vmatprep.mubr.f32.mxu0 0.0
    %370 = vmatmul.mubr.f32.gmra.mrb[0].mxu0 %v301
    %v371 = vpop.f32.mrb[0].mxu0
    %v372 = vadd.f32 0.0, %v371
    %v373 = vpop.f32.mrb[0].mxu0
    %374 = vdwg.mxu0
    %375 = vrot.lane.b32.xlu0 %v149, 120
    %v376 = vpop.permute.xlu0 %375
    %377 = vrot.lane.b32.xlu0 %v143, 88
    %v378 = vpop.permute.xlu0 %377
    %v379 = vsel %vm299, %v376, 0
    %v381 = vsel %vm299, %v378, 0
    %383 = vmatprep.subr.mxu0 0.0
    %384 = vmatpush1.xpose.msra.mxu0 %v381
    %385 = vmatprep.subr.mxu0 0.0
    %386 = vmatpush1.xpose.msra.mxu0 0.0
    %387 = vmatprep.subr.mxu0 0.0
    %388 = vmatpush1.xpose.msra.mxu0 0.0
    %389 = vmatprep.subr.mxu0 0.0
    %390 = vmatpush1.xpose.msra.mxu0 0.0
    %391 = vmatprep.subr.mxu0 0.0
    %392 = vmatpush1.xpose.msra.mxu0 0.0
    %393 = vmatprep.subr.mxu0 0.0
    %394 = vmatpush1.xpose.msra.mxu0 0.0
    %395 = vmatprep.subr.mxu0 0.0
    %396 = vmatpush1.xpose.msra.mxu0 0.0
    %397 = vmatprep.subr.mxu0 0.0
    %398 = vmatpush1.xpose.msra.mxu0 0.0
    %399 = vmatprep.subr.mxu0 0.0
    %400 = vmatpush1.xpose.msra.mxu0 0.0
    %401 = vmatprep.subr.mxu0 0.0
    %402 = vmatpush1.xpose.msra.mxu0 0.0
    %403 = vmatprep.subr.mxu0 0.0
    %404 = vmatpush1.xpose.msra.mxu0 0.0
    %405 = vmatprep.subr.mxu0 0.0
    %406 = vmatpush1.xpose.msra.mxu0 0.0
    %407 = vmatprep.subr.mxu0 0.0
    %408 = vmatpush1.xpose.msra.mxu0 0.0
    %409 = vmatprep.subr.mxu0 0.0
    %410 = vmatpush1.xpose.msra.mxu0 0.0
    %411 = vmatprep.subr.mxu0 0.0
    %412 = vmatpush1.xpose.msra.mxu0 0.0
    %413 = vmatprep.subr.mxu0 0.0
    %414 = vmatpush1.xpose.msra.mxu0 0.0
    %415 = vmatprep.subr.mxu0 0.0
    %416 = vmatpush1.xpose.msra.mxu0 0.0
    %417 = vmatprep.subr.mxu0 0.0
    %418 = vmatpush1.xpose.msra.mxu0 0.0
    %419 = vmatprep.subr.mxu0 0.0
    %420 = vmatpush1.xpose.msra.mxu0 0.0
    %421 = vmatprep.subr.mxu0 0.0
    %422 = vmatpush1.xpose.msra.mxu0 0.0
    %423 = vmatprep.subr.mxu0 0.0
    %424 = vmatpush1.xpose.msra.mxu0 0.0
    %425 = vmatprep.subr.mxu0 0.0
    %426 = vmatpush1.xpose.msra.mxu0 0.0
    %427 = vmatprep.subr.mxu0 0.0
    %428 = vmatpush1.xpose.msra.mxu0 0.0
    %429 = vmatprep.subr.mxu0 0.0
    %430 = vmatpush1.xpose.msra.mxu0 0.0
    %431 = vmatprep.subr.mxu0 0.0
    %432 = vmatpush1.xpose.msra.mxu0 0.0
    %433 = vmatprep.subr.mxu0 0.0
    %434 = vmatpush1.xpose.msra.mxu0 0.0
    %435 = vmatprep.subr.mxu0 0.0
    %436 = vmatpush1.xpose.msra.mxu0 0.0
    %437 = vmatprep.subr.mxu0 0.0
    %438 = vmatpush1.xpose.msra.mxu0 0.0
    %439 = vmatprep.subr.mxu0 0.0
    %440 = vmatpush1.xpose.msra.mxu0 0.0
    %441 = vmatprep.subr.mxu0 0.0
    %442 = vmatpush1.xpose.msra.mxu0 0.0
    %443 = vmatprep.subr.mxu0 0.0
    %444 = vmatpush1.xpose.msra.mxu0 0.0
    %445 = vmatprep.subr.mxu0 0.0
    %446 = vmatpush1.xpose.msra.mxu0 0.0
    %447 = vmatprep.mubr.f32.mxu0 0.0
    %448 = vmatmul.mubr.f32.gmra.mrb[0].mxu0 %v379
    %v449 = vpop.f32.mrb[0].mxu0
    %v450 = vadd.f32 0.0, %v449
    %v451 = vpop.f32.mrb[0].mxu0
    %452 = vdwg.mxu0
    %453 = vrot.lane.b32.xlu0 %v149, 112
    %v454 = vpop.permute.xlu0 %453
    %455 = vrot.lane.b32.xlu0 %v143, 80
    %v456 = vpop.permute.xlu0 %455
    %v457 = vsel %vm299, %v454, 0
    %v459 = vsel %vm299, %v456, 0
    %461 = vmatprep.subr.mxu0 0.0
    %462 = vmatpush1.xpose.msra.mxu0 %v459
    %463 = vmatprep.subr.mxu0 0.0
    %464 = vmatpush1.xpose.msra.mxu0 0.0
    %465 = vmatprep.subr.mxu0 0.0
    %466 = vmatpush1.xpose.msra.mxu0 0.0
    %467 = vmatprep.subr.mxu0 0.0
    %468 = vmatpush1.xpose.msra.mxu0 0.0
    %469 = vmatprep.subr.mxu0 0.0
    %470 = vmatpush1.xpose.msra.mxu0 0.0
    %471 = vmatprep.subr.mxu0 0.0
    %472 = vmatpush1.xpose.msra.mxu0 0.0
    %473 = vmatprep.subr.mxu0 0.0
    %474 = vmatpush1.xpose.msra.mxu0 0.0
    %475 = vmatprep.subr.mxu0 0.0
    %476 = vmatpush1.xpose.msra.mxu0 0.0
    %477 = vmatprep.subr.mxu0 0.0
    %478 = vmatpush1.xpose.msra.mxu0 0.0
    %479 = vmatprep.subr.mxu0 0.0
    %480 = vmatpush1.xpose.msra.mxu0 0.0
    %481 = vmatprep.subr.mxu0 0.0
    %482 = vmatpush1.xpose.msra.mxu0 0.0
    %483 = vmatprep.subr.mxu0 0.0
    %484 = vmatpush1.xpose.msra.mxu0 0.0
    %485 = vmatprep.subr.mxu0 0.0
    %486 = vmatpush1.xpose.msra.mxu0 0.0
    %487 = vmatprep.subr.mxu0 0.0
    %488 = vmatpush1.xpose.msra.mxu0 0.0
    %489 = vmatprep.subr.mxu0 0.0
    %490 = vmatpush1.xpose.msra.mxu0 0.0
    %491 = vmatprep.subr.mxu0 0.0
    %492 = vmatpush1.xpose.msra.mxu0 0.0
    %493 = vmatprep.subr.mxu0 0.0
    %494 = vmatpush1.xpose.msra.mxu0 0.0
    %495 = vmatprep.subr.mxu0 0.0
    %496 = vmatpush1.xpose.msra.mxu0 0.0
    %497 = vmatprep.subr.mxu0 0.0
    %498 = vmatpush1.xpose.msra.mxu0 0.0
    %499 = vmatprep.subr.mxu0 0.0
    %500 = vmatpush1.xpose.msra.mxu0 0.0
    %501 = vmatprep.subr.mxu0 0.0
    %502 = vmatpush1.xpose.msra.mxu0 0.0
    %503 = vmatprep.subr.mxu0 0.0
    %504 = vmatpush1.xpose.msra.mxu0 0.0
    %505 = vmatprep.subr.mxu0 0.0
    %506 = vmatpush1.xpose.msra.mxu0 0.0
    %507 = vmatprep.subr.mxu0 0.0
    %508 = vmatpush1.xpose.msra.mxu0 0.0
    %509 = vmatprep.subr.mxu0 0.0
    %510 = vmatpush1.xpose.msra.mxu0 0.0
    %511 = vmatprep.subr.mxu0 0.0
    %512 = vmatpush1.xpose.msra.mxu0 0.0
    %513 = vmatprep.subr.mxu0 0.0
    %514 = vmatpush1.xpose.msra.mxu0 0.0
    %515 = vmatprep.subr.mxu0 0.0
    %516 = vmatpush1.xpose.msra.mxu0 0.0
    %517 = vmatprep.subr.mxu0 0.0
    %518 = vmatpush1.xpose.msra.mxu0 0.0
    %519 = vmatprep.subr.mxu0 0.0
    %520 = vmatpush1.xpose.msra.mxu0 0.0
    %521 = vmatprep.subr.mxu0 0.0
    %522 = vmatpush1.xpose.msra.mxu0 0.0
    %523 = vmatprep.subr.mxu0 0.0
    %524 = vmatpush1.xpose.msra.mxu0 0.0
    %525 = vmatprep.mubr.f32.mxu0 0.0
    %526 = vmatmul.mubr.f32.gmra.mrb[0].mxu0 %v457
    %v527 = vpop.f32.mrb[0].mxu0
    %v528 = vadd.f32 0.0, %v527
    %v529 = vpop.f32.mrb[0].mxu0
    %530 = vdwg.mxu0
    %531 = vrot.lane.b32.xlu0 %v149, 104
    %v532 = vpop.permute.xlu0 %531
    %533 = vrot.lane.b32.xlu0 %v143, 72
    %v534 = vpop.permute.xlu0 %533
    %v535 = vsel %vm299, %v532, 0
    %v537 = vsel %vm299, %v534, 0
    %539 = vmatprep.subr.mxu0 0.0
    %540 = vmatpush1.xpose.msra.mxu0 %v537
    %541 = vmatprep.subr.mxu0 0.0
    %542 = vmatpush1.xpose.msra.mxu0 0.0
    %543 = vmatprep.subr.mxu0 0.0
    %544 = vmatpush1.xpose.msra.mxu0 0.0
    %545 = vmatprep.subr.mxu0 0.0
    %546 = vmatpush1.xpose.msra.mxu0 0.0
    %547 = vmatprep.subr.mxu0 0.0
    %548 = vmatpush1.xpose.msra.mxu0 0.0
    %549 = vmatprep.subr.mxu0 0.0
    %550 = vmatpush1.xpose.msra.mxu0 0.0
    %551 = vmatprep.subr.mxu0 0.0
    %552 = vmatpush1.xpose.msra.mxu0 0.0
    %553 = vmatprep.subr.mxu0 0.0
    %554 = vmatpush1.xpose.msra.mxu0 0.0
    %555 = vmatprep.subr.mxu0 0.0
    %556 = vmatpush1.xpose.msra.mxu0 0.0
    %557 = vmatprep.subr.mxu0 0.0
    %558 = vmatpush1.xpose.msra.mxu0 0.0
    %559 = vmatprep.subr.mxu0 0.0
    %560 = vmatpush1.xpose.msra.mxu0 0.0
    %561 = vmatprep.subr.mxu0 0.0
    %562 = vmatpush1.xpose.msra.mxu0 0.0
    %563 = vmatprep.subr.mxu0 0.0
    %564 = vmatpush1.xpose.msra.mxu0 0.0
    %565 = vmatprep.subr.mxu0 0.0
    %566 = vmatpush1.xpose.msra.mxu0 0.0
    %567 = vmatprep.subr.mxu0 0.0
    %568 = vmatpush1.xpose.msra.mxu0 0.0
    %569 = vmatprep.subr.mxu0 0.0
    %570 = vmatpush1.xpose.msra.mxu0 0.0
    %571 = vmatprep.subr.mxu0 0.0
    %572 = vmatpush1.xpose.msra.mxu0 0.0
    %573 = vmatprep.subr.mxu0 0.0
    %574 = vmatpush1.xpose.msra.mxu0 0.0
    %575 = vmatprep.subr.mxu0 0.0
    %576 = vmatpush1.xpose.msra.mxu0 0.0
    %577 = vmatprep.subr.mxu0 0.0
    %578 = vmatpush1.xpose.msra.mxu0 0.0
    %579 = vmatprep.subr.mxu0 0.0
    %580 = vmatpush1.xpose.msra.mxu0 0.0
    %581 = vmatprep.subr.mxu0 0.0
    %582 = vmatpush1.xpose.msra.mxu0 0.0
    %583 = vmatprep.subr.mxu0 0.0
    %584 = vmatpush1.xpose.msra.mxu0 0.0
    %585 = vmatprep.subr.mxu0 0.0
    %586 = vmatpush1.xpose.msra.mxu0 0.0
    %587 = vmatprep.subr.mxu0 0.0
    %588 = vmatpush1.xpose.msra.mxu0 0.0
    %589 = vmatprep.subr.mxu0 0.0
    %590 = vmatpush1.xpose.msra.mxu0 0.0
    %591 = vmatprep.subr.mxu0 0.0
    %592 = vmatpush1.xpose.msra.mxu0 0.0
    %593 = vmatprep.subr.mxu0 0.0
    %594 = vmatpush1.xpose.msra.mxu0 0.0
    %595 = vmatprep.subr.mxu0 0.0
    %596 = vmatpush1.xpose.msra.mxu0 0.0
    %597 = vmatprep.subr.mxu0 0.0
    %598 = vmatpush1.xpose.msra.mxu0 0.0
    %599 = vmatprep.subr.mxu0 0.0
    %600 = vmatpush1.xpose.msra.mxu0 0.0
    %601 = vmatprep.subr.mxu0 0.0
    %602 = vmatpush1.xpose.msra.mxu0 0.0
    %603 = vmatprep.mubr.f32.mxu0 0.0
    %604 = vmatmul.mubr.f32.gmra.mrb[0].mxu0 %v535
    %v605 = vpop.f32.mrb[0].mxu0
    %v606 = vadd.f32 0.0, %v605
    %v607 = vpop.f32.mrb[0].mxu0
    %608 = vdwg.mxu0
    %610 = vrot.lane.b32.xlu0 %v146, 96
    %v611 = vpop.permute.xlu0 %610
    %v613 = vsel %vm299, %v150, 0
    %v615 = vsel %vm299, %v611, 0
    %617 = vmatprep.subr.mxu0 0.0
    %618 = vmatpush1.xpose.msra.mxu0 %v615
    %619 = vmatprep.subr.mxu0 0.0
    %620 = vmatpush1.xpose.msra.mxu0 0.0
    %621 = vmatprep.subr.mxu0 0.0
    %622 = vmatpush1.xpose.msra.mxu0 0.0
    %623 = vmatprep.subr.mxu0 0.0
    %624 = vmatpush1.xpose.msra.mxu0 0.0
    %625 = vmatprep.subr.mxu0 0.0
    %626 = vmatpush1.xpose.msra.mxu0 0.0
    %627 = vmatprep.subr.mxu0 0.0
    %628 = vmatpush1.xpose.msra.mxu0 0.0
    %629 = vmatprep.subr.mxu0 0.0
    %630 = vmatpush1.xpose.msra.mxu0 0.0
    %631 = vmatprep.subr.mxu0 0.0
    %632 = vmatpush1.xpose.msra.mxu0 0.0
    %633 = vmatprep.subr.mxu0 0.0
    %634 = vmatpush1.xpose.msra.mxu0 0.0
    %635 = vmatprep.subr.mxu0 0.0
    %636 = vmatpush1.xpose.msra.mxu0 0.0
    %637 = vmatprep.subr.mxu0 0.0
    %638 = vmatpush1.xpose.msra.mxu0 0.0
    %639 = vmatprep.subr.mxu0 0.0
    %640 = vmatpush1.xpose.msra.mxu0 0.0
    %641 = vmatprep.subr.mxu0 0.0
    %642 = vmatpush1.xpose.msra.mxu0 0.0
    %643 = vmatprep.subr.mxu0 0.0
    %644 = vmatpush1.xpose.msra.mxu0 0.0
    %645 = vmatprep.subr.mxu0 0.0
    %646 = vmatpush1.xpose.msra.mxu0 0.0
    %647 = vmatprep.subr.mxu0 0.0
    %648 = vmatpush1.xpose.msra.mxu0 0.0
    %649 = vmatprep.subr.mxu0 0.0
    %650 = vmatpush1.xpose.msra.mxu0 0.0
    %651 = vmatprep.subr.mxu0 0.0
    %652 = vmatpush1.xpose.msra.mxu0 0.0
    %653 = vmatprep.subr.mxu0 0.0
    %654 = vmatpush1.xpose.msra.mxu0 0.0
    %655 = vmatprep.subr.mxu0 0.0
    %656 = vmatpush1.xpose.msra.mxu0 0.0
    %657 = vmatprep.subr.mxu0 0.0
    %658 = vmatpush1.xpose.msra.mxu0 0.0
    %659 = vmatprep.subr.mxu0 0.0
    %660 = vmatpush1.xpose.msra.mxu0 0.0
    %661 = vmatprep.subr.mxu0 0.0
    %662 = vmatpush1.xpose.msra.mxu0 0.0
    %663 = vmatprep.subr.mxu0 0.0
    %664 = vmatpush1.xpose.msra.mxu0 0.0
    %665 = vmatprep.subr.mxu0 0.0
    %666 = vmatpush1.xpose.msra.mxu0 0.0
    %667 = vmatprep.subr.mxu0 0.0
    %668 = vmatpush1.xpose.msra.mxu0 0.0
    %669 = vmatprep.subr.mxu0 0.0
    %670 = vmatpush1.xpose.msra.mxu0 0.0
    %671 = vmatprep.subr.mxu0 0.0
    %672 = vmatpush1.xpose.msra.mxu0 0.0
    %673 = vmatprep.subr.mxu0 0.0
    %674 = vmatpush1.xpose.msra.mxu0 0.0
    %675 = vmatprep.subr.mxu0 0.0
    %676 = vmatpush1.xpose.msra.mxu0 0.0
    %677 = vmatprep.subr.mxu0 0.0
    %678 = vmatpush1.xpose.msra.mxu0 0.0
    %679 = vmatprep.subr.mxu0 0.0
    %680 = vmatpush1.xpose.msra.mxu0 0.0
    %681 = vmatprep.mubr.f32.mxu0 0.0
    %682 = vmatmul.mubr.f32.gmra.mrb[0].mxu0 %v613
    %v683 = vpop.f32.mrb[0].mxu0
    %v684 = vadd.f32 0.0, %v683
    %v685 = vpop.f32.mrb[0].mxu0
    %686 = vdwg.mxu0
    %687 = vrot.lane.b32.xlu0 %v150, 120
    %v688 = vpop.permute.xlu0 %687
    %689 = vrot.lane.b32.xlu0 %v146, 88
    %v690 = vpop.permute.xlu0 %689
    %v691 = vsel %vm299, %v688, 0
    %v693 = vsel %vm299, %v690, 0
    %695 = vmatprep.subr.mxu0 0.0
    %696 = vmatpush1.xpose.msra.mxu0 %v693
    %697 = vmatprep.subr.mxu0 0.0
    %698 = vmatpush1.xpose.msra.mxu0 0.0
    %699 = vmatprep.subr.mxu0 0.0
    %700 = vmatpush1.xpose.msra.mxu0 0.0
    %701 = vmatprep.subr.mxu0 0.0
    %702 = vmatpush1.xpose.msra.mxu0 0.0
    %703 = vmatprep.subr.mxu0 0.0
    %704 = vmatpush1.xpose.msra.mxu0 0.0
    %705 = vmatprep.subr.mxu0 0.0
    %706 = vmatpush1.xpose.msra.mxu0 0.0
    %707 = vmatprep.subr.mxu0 0.0
    %708 = vmatpush1.xpose.msra.mxu0 0.0
    %709 = vmatprep.subr.mxu0 0.0
    %710 = vmatpush1.xpose.msra.mxu0 0.0
    %711 = vmatprep.subr.mxu0 0.0
    %712 = vmatpush1.xpose.msra.mxu0 0.0
    %713 = vmatprep.subr.mxu0 0.0
    %714 = vmatpush1.xpose.msra.mxu0 0.0
    %715 = vmatprep.subr.mxu0 0.0
    %716 = vmatpush1.xpose.msra.mxu0 0.0
    %717 = vmatprep.subr.mxu0 0.0
    %718 = vmatpush1.xpose.msra.mxu0 0.0
    %719 = vmatprep.subr.mxu0 0.0
    %720 = vmatpush1.xpose.msra.mxu0 0.0
    %721 = vmatprep.subr.mxu0 0.0
    %722 = vmatpush1.xpose.msra.mxu0 0.0
    %723 = vmatprep.subr.mxu0 0.0
    %724 = vmatpush1.xpose.msra.mxu0 0.0
    %725 = vmatprep.subr.mxu0 0.0
    %726 = vmatpush1.xpose.msra.mxu0 0.0
    %727 = vmatprep.subr.mxu0 0.0
    %728 = vmatpush1.xpose.msra.mxu0 0.0
    %729 = vmatprep.subr.mxu0 0.0
    %730 = vmatpush1.xpose.msra.mxu0 0.0
    %731 = vmatprep.subr.mxu0 0.0
    %732 = vmatpush1.xpose.msra.mxu0 0.0
    %733 = vmatprep.subr.mxu0 0.0
    %734 = vmatpush1.xpose.msra.mxu0 0.0
    %735 = vmatprep.subr.mxu0 0.0
    %736 = vmatpush1.xpose.msra.mxu0 0.0
    %737 = vmatprep.subr.mxu0 0.0
    %738 = vmatpush1.xpose.msra.mxu0 0.0
    %739 = vmatprep.subr.mxu0 0.0
    %740 = vmatpush1.xpose.msra.mxu0 0.0
    %741 = vmatprep.subr.mxu0 0.0
    %742 = vmatpush1.xpose.msra.mxu0 0.0
    %743 = vmatprep.subr.mxu0 0.0
    %744 = vmatpush1.xpose.msra.mxu0 0.0
    %745 = vmatprep.subr.mxu0 0.0
    %746 = vmatpush1.xpose.msra.mxu0 0.0
    %747 = vmatprep.subr.mxu0 0.0
    %748 = vmatpush1.xpose.msra.mxu0 0.0
    %749 = vmatprep.subr.mxu0 0.0
    %750 = vmatpush1.xpose.msra.mxu0 0.0
    %751 = vmatprep.subr.mxu0 0.0
    %752 = vmatpush1.xpose.msra.mxu0 0.0
    %753 = vmatprep.subr.mxu0 0.0
    %754 = vmatpush1.xpose.msra.mxu0 0.0
    %755 = vmatprep.subr.mxu0 0.0
    %756 = vmatpush1.xpose.msra.mxu0 0.0
    %757 = vmatprep.subr.mxu0 0.0
    %758 = vmatpush1.xpose.msra.mxu0 0.0
    %759 = vmatprep.mubr.f32.mxu0 0.0
    %760 = vmatmul.mubr.f32.gmra.mrb[0].mxu0 %v691
    %v761 = vpop.f32.mrb[0].mxu0
    %v762 = vadd.f32 0.0, %v761
    %v763 = vpop.f32.mrb[0].mxu0
    %764 = vdwg.mxu0
    %765 = vrot.lane.b32.xlu0 %v150, 112
    %v766 = vpop.permute.xlu0 %765
    %767 = vrot.lane.b32.xlu0 %v146, 80
    %v768 = vpop.permute.xlu0 %767
    %v769 = vsel %vm299, %v766, 0
    %v771 = vsel %vm299, %v768, 0
    %773 = vmatprep.subr.mxu0 0.0
    %774 = vmatpush1.xpose.msra.mxu0 %v771
    %775 = vmatprep.subr.mxu0 0.0
    %776 = vmatpush1.xpose.msra.mxu0 0.0
    %777 = vmatprep.subr.mxu0 0.0
    %778 = vmatpush1.xpose.msra.mxu0 0.0
    %779 = vmatprep.subr.mxu0 0.0
    %780 = vmatpush1.xpose.msra.mxu0 0.0
    %781 = vmatprep.subr.mxu0 0.0
    %782 = vmatpush1.xpose.msra.mxu0 0.0
    %783 = vmatprep.subr.mxu0 0.0
    %784 = vmatpush1.xpose.msra.mxu0 0.0
    %785 = vmatprep.subr.mxu0 0.0
    %786 = vmatpush1.xpose.msra.mxu0 0.0
    %787 = vmatprep.subr.mxu0 0.0
    %788 = vmatpush1.xpose.msra.mxu0 0.0
    %789 = vmatprep.subr.mxu0 0.0
    %790 = vmatpush1.xpose.msra.mxu0 0.0
    %791 = vmatprep.subr.mxu0 0.0
    %792 = vmatpush1.xpose.msra.mxu0 0.0
    %793 = vmatprep.subr.mxu0 0.0
    %794 = vmatpush1.xpose.msra.mxu0 0.0
    %795 = vmatprep.subr.mxu0 0.0
    %796 = vmatpush1.xpose.msra.mxu0 0.0
    %797 = vmatprep.subr.mxu0 0.0
    %798 = vmatpush1.xpose.msra.mxu0 0.0
    %799 = vmatprep.subr.mxu0 0.0
    %800 = vmatpush1.xpose.msra.mxu0 0.0
    %801 = vmatprep.subr.mxu0 0.0
    %802 = vmatpush1.xpose.msra.mxu0 0.0
    %803 = vmatprep.subr.mxu0 0.0
    %804 = vmatpush1.xpose.msra.mxu0 0.0
    %805 = vmatprep.subr.mxu0 0.0
    %806 = vmatpush1.xpose.msra.mxu0 0.0
    %807 = vmatprep.subr.mxu0 0.0
    %808 = vmatpush1.xpose.msra.mxu0 0.0
    %809 = vmatprep.subr.mxu0 0.0
    %810 = vmatpush1.xpose.msra.mxu0 0.0
    %811 = vmatprep.subr.mxu0 0.0
    %812 = vmatpush1.xpose.msra.mxu0 0.0
    %813 = vmatprep.subr.mxu0 0.0
    %814 = vmatpush1.xpose.msra.mxu0 0.0
    %815 = vmatprep.subr.mxu0 0.0
    %816 = vmatpush1.xpose.msra.mxu0 0.0
    %817 = vmatprep.subr.mxu0 0.0
    %818 = vmatpush1.xpose.msra.mxu0 0.0
    %819 = vmatprep.subr.mxu0 0.0
    %820 = vmatpush1.xpose.msra.mxu0 0.0
    %821 = vmatprep.subr.mxu0 0.0
    %822 = vmatpush1.xpose.msra.mxu0 0.0
    %823 = vmatprep.subr.mxu0 0.0
    %824 = vmatpush1.xpose.msra.mxu0 0.0
    %825 = vmatprep.subr.mxu0 0.0
    %826 = vmatpush1.xpose.msra.mxu0 0.0
    %827 = vmatprep.subr.mxu0 0.0
    %828 = vmatpush1.xpose.msra.mxu0 0.0
    %829 = vmatprep.subr.mxu0 0.0
    %830 = vmatpush1.xpose.msra.mxu0 0.0
    %831 = vmatprep.subr.mxu0 0.0
    %832 = vmatpush1.xpose.msra.mxu0 0.0
    %833 = vmatprep.subr.mxu0 0.0
    %834 = vmatpush1.xpose.msra.mxu0 0.0
    %835 = vmatprep.subr.mxu0 0.0
    %836 = vmatpush1.xpose.msra.mxu0 0.0
    %837 = vmatprep.mubr.f32.mxu0 0.0
    %838 = vmatmul.mubr.f32.gmra.mrb[0].mxu0 %v769
    %v839 = vpop.f32.mrb[0].mxu0
    %v840 = vadd.f32 0.0, %v839
    %v841 = vpop.f32.mrb[0].mxu0
    %842 = vdwg.mxu0
    %843 = vrot.lane.b32.xlu0 %v150, 104
    %v844 = vpop.permute.xlu0 %843
    %845 = vrot.lane.b32.xlu0 %v146, 72
    %v846 = vpop.permute.xlu0 %845
    %v847 = vsel %vm299, %v844, 0
    %v849 = vsel %vm299, %v846, 0
    %851 = vmatprep.subr.mxu0 0.0
    %852 = vmatpush1.xpose.msra.mxu0 %v849
    %853 = vmatprep.subr.mxu0 0.0
    %854 = vmatpush1.xpose.msra.mxu0 0.0
    %855 = vmatprep.subr.mxu0 0.0
    %856 = vmatpush1.xpose.msra.mxu0 0.0
    %857 = vmatprep.subr.mxu0 0.0
    %858 = vmatpush1.xpose.msra.mxu0 0.0
    %859 = vmatprep.subr.mxu0 0.0
    %860 = vmatpush1.xpose.msra.mxu0 0.0
    %861 = vmatprep.subr.mxu0 0.0
    %862 = vmatpush1.xpose.msra.mxu0 0.0
    %863 = vmatprep.subr.mxu0 0.0
    %864 = vmatpush1.xpose.msra.mxu0 0.0
    %865 = vmatprep.subr.mxu0 0.0
    %866 = vmatpush1.xpose.msra.mxu0 0.0
    %867 = vmatprep.subr.mxu0 0.0
    %868 = vmatpush1.xpose.msra.mxu0 0.0
    %869 = vmatprep.subr.mxu0 0.0
    %870 = vmatpush1.xpose.msra.mxu0 0.0
    %871 = vmatprep.subr.mxu0 0.0
    %872 = vmatpush1.xpose.msra.mxu0 0.0
    %873 = vmatprep.subr.mxu0 0.0
    %874 = vmatpush1.xpose.msra.mxu0 0.0
    %875 = vmatprep.subr.mxu0 0.0
    %876 = vmatpush1.xpose.msra.mxu0 0.0
    %877 = vmatprep.subr.mxu0 0.0
    %878 = vmatpush1.xpose.msra.mxu0 0.0
    %879 = vmatprep.subr.mxu0 0.0
    %880 = vmatpush1.xpose.msra.mxu0 0.0
    %881 = vmatprep.subr.mxu0 0.0
    %882 = vmatpush1.xpose.msra.mxu0 0.0
    %883 = vmatprep.subr.mxu0 0.0
    %884 = vmatpush1.xpose.msra.mxu0 0.0
    %885 = vmatprep.subr.mxu0 0.0
    %886 = vmatpush1.xpose.msra.mxu0 0.0
    %887 = vmatprep.subr.mxu0 0.0
    %888 = vmatpush1.xpose.msra.mxu0 0.0
    %889 = vmatprep.subr.mxu0 0.0
    %890 = vmatpush1.xpose.msra.mxu0 0.0
    %891 = vmatprep.subr.mxu0 0.0
    %892 = vmatpush1.xpose.msra.mxu0 0.0
    %893 = vmatprep.subr.mxu0 0.0
    %894 = vmatpush1.xpose.msra.mxu0 0.0
    %895 = vmatprep.subr.mxu0 0.0
    %896 = vmatpush1.xpose.msra.mxu0 0.0
    %897 = vmatprep.subr.mxu0 0.0
    %898 = vmatpush1.xpose.msra.mxu0 0.0
    %899 = vmatprep.subr.mxu0 0.0
    %900 = vmatpush1.xpose.msra.mxu0 0.0
    %901 = vmatprep.subr.mxu0 0.0
    %902 = vmatpush1.xpose.msra.mxu0 0.0
    %903 = vmatprep.subr.mxu0 0.0
    %904 = vmatpush1.xpose.msra.mxu0 0.0
    %905 = vmatprep.subr.mxu0 0.0
    %906 = vmatpush1.xpose.msra.mxu0 0.0
    %907 = vmatprep.subr.mxu0 0.0
    %908 = vmatpush1.xpose.msra.mxu0 0.0
    %909 = vmatprep.subr.mxu0 0.0
    %910 = vmatpush1.xpose.msra.mxu0 0.0
    %911 = vmatprep.subr.mxu0 0.0
    %912 = vmatpush1.xpose.msra.mxu0 0.0
    %913 = vmatprep.subr.mxu0 0.0
    %914 = vmatpush1.xpose.msra.mxu0 0.0
    %915 = vmatprep.mubr.f32.mxu0 0.0
    %916 = vmatmul.mubr.f32.gmra.mrb[0].mxu0 %v847
    %v917 = vpop.f32.mrb[0].mxu0
    %v918 = vadd.f32 0.0, %v917
    %v919 = vpop.f32.mrb[0].mxu0
    %920 = vdwg.mxu0
    %v921 = vadd.f32 %v372, %v266
    %v922 = vadd.f32 %v450, %v269
    %v923 = vadd.f32 %v528, %v274
    %v924 = vadd.f32 %v606, %v277
    %v925 = vadd.f32 %v684, %v282
    %v926 = vadd.f32 %v762, %v285
    %v927 = vadd.f32 %v840, %v290
    %v928 = vadd.f32 %v918, %v293
    %v929 = vsel %vm299, %v921, -inf
    %930 = vmax.xlane.f32.xlu0 %v929
    %v931 = vpop.xlane.xlu0 %930
    %v932 = vsel %vm299, %v922, -inf
    %933 = vmax.xlane.f32.xlu0 %v932
    %v934 = vpop.xlane.xlu0 %933
    %v935 = vsel %vm299, %v923, -inf
    %936 = vmax.xlane.f32.xlu0 %v935
    %v937 = vpop.xlane.xlu0 %936
    %v938 = vsel %vm299, %v924, -inf
    %939 = vmax.xlane.f32.xlu0 %v938
    %v940 = vpop.xlane.xlu0 %939
    %v941 = vsel %vm299, %v925, -inf
    %942 = vmax.xlane.f32.xlu0 %v941
    %v943 = vpop.xlane.xlu0 %942
    %v944 = vsel %vm299, %v926, -inf
    %945 = vmax.xlane.f32.xlu0 %v944
    %v946 = vpop.xlane.xlu0 %945
    %v947 = vsel %vm299, %v927, -inf
    %948 = vmax.xlane.f32.xlu0 %v947
    %v949 = vpop.xlane.xlu0 %948
    %v950 = vsel %vm299, %v928, -inf
    %951 = vmax.xlane.f32.xlu0 %v950
    %v952 = vpop.xlane.xlu0 %951
    %v953 = vsub.f32 %v921, %v931
    %v954 = vsub.f32 %v922, %v934
    %v955 = vsub.f32 %v923, %v937
    %v956 = vsub.f32 %v924, %v940
    %v957 = vsub.f32 %v925, %v943
    %v958 = vsub.f32 %v926, %v946
    %v959 = vsub.f32 %v927, %v949
    %v960 = vsub.f32 %v928, %v952
    %v961 = vmul.f32 %v953, 1.442695
    %v962 = vpow.pop %v961
    %v963 = vmul.f32 %v954, 1.442695
    %v964 = vpow.pop %v963
    %v965 = vmul.f32 %v955, 1.442695
    %v966 = vpow.pop %v965
    %v967 = vmul.f32 %v956, 1.442695
    %v968 = vpow.pop %v967
    %v969 = vmul.f32 %v957, 1.442695
    %v970 = vpow.pop %v969
    %v971 = vmul.f32 %v958, 1.442695
    %v972 = vpow.pop %v971
    %v973 = vmul.f32 %v959, 1.442695
    %v974 = vpow.pop %v973
    %v975 = vmul.f32 %v960, 1.442695
    %v976 = vpow.pop %v975
    %v977 = vsel %vm299, %v962, 0.0
    %978 = vadd.xlane.f32.xlu0 %v977
    %v979 = vpop.xlane.xlu0 %978
    %v980 = vsel %vm299, %v964, 0.0
    %981 = vadd.xlane.f32.xlu0 %v980
    %v982 = vpop.xlane.xlu0 %981
    %v983 = vsel %vm299, %v966, 0.0
    %984 = vadd.xlane.f32.xlu0 %v983
    %v985 = vpop.xlane.xlu0 %984
    %v986 = vsel %vm299, %v968, 0.0
    %987 = vadd.xlane.f32.xlu0 %v986
    %v988 = vpop.xlane.xlu0 %987
    %v989 = vsel %vm299, %v970, 0.0
    %990 = vadd.xlane.f32.xlu0 %v989
    %v991 = vpop.xlane.xlu0 %990
    %v992 = vsel %vm299, %v972, 0.0
    %993 = vadd.xlane.f32.xlu0 %v992
    %v994 = vpop.xlane.xlu0 %993
    %v995 = vsel %vm299, %v974, 0.0
    %996 = vadd.xlane.f32.xlu0 %v995
    %v997 = vpop.xlane.xlu0 %996
    %v998 = vsel %vm299, %v976, 0.0
    %999 = vadd.xlane.f32.xlu0 %v998
    %v1000 = vpop.xlane.xlu0 %999
    %v1001 = vrcp.pop %v979
    %v1002 = vrcp.pop %v982
    %v1003 = vrcp.pop %v985
    %v1004 = vrcp.pop %v988
    %v1005 = vrcp.pop %v991
    %v1006 = vrcp.pop %v994
    %v1007 = vrcp.pop %v997
    %v1008 = vrcp.pop %v1000
    %v1009 = vmul.f32 %v962, %v1001
    %v1010 = vmul.f32 %v964, %v1002
    %v1011 = vmul.f32 %v966, %v1003
    %v1012 = vmul.f32 %v968, %v1004
    %v1013 = vmul.f32 %v970, %v1005
    %v1014 = vmul.f32 %v972, %v1006
    %v1015 = vmul.f32 %v974, %v1007
    %v1016 = vmul.f32 %v976, %v1008
    %1017 = vrot.lane.b32.xlu0 %v143, 64
    %v1018 = vpop.permute.xlu0 %1017
    %v1021 = vsel %vm299, %v1009, 0
    %1023 = vmatprep.subr.mxu0 0.0
    %1024 = vmatpush1.msra.mxu0 %v1018
    %1025 = vmatprep.subr.mxu0 0.0
    %1026 = vmatpush1.msra.mxu0 0.0
    %1027 = vmatprep.subr.mxu0 0.0
    %1028 = vmatpush1.msra.mxu0 0.0
    %1029 = vmatprep.subr.mxu0 0.0
    %1030 = vmatpush1.msra.mxu0 0.0
    %1031 = vmatprep.subr.mxu0 0.0
    %1032 = vmatpush1.msra.mxu0 0.0
    %1033 = vmatprep.subr.mxu0 0.0
    %1034 = vmatpush1.msra.mxu0 0.0
    %1035 = vmatprep.subr.mxu0 0.0
    %1036 = vmatpush1.msra.mxu0 0.0
    %1037 = vmatprep.subr.mxu0 0.0
    %1038 = vmatpush1.msra.mxu0 0.0
    %1039 = vmatprep.subr.mxu0 0.0
    %1040 = vmatpush1.msra.mxu0 0.0
    %1041 = vmatprep.subr.mxu0 0.0
    %1042 = vmatpush1.msra.mxu0 0.0
    %1043 = vmatprep.subr.mxu0 0.0
    %1044 = vmatpush1.msra.mxu0 0.0
    %1045 = vmatprep.subr.mxu0 0.0
    %1046 = vmatpush1.msra.mxu0 0.0
    %1047 = vmatprep.subr.mxu0 0.0
    %1048 = vmatpush1.msra.mxu0 0.0
    %1049 = vmatprep.subr.mxu0 0.0
    %1050 = vmatpush1.msra.mxu0 0.0
    %1051 = vmatprep.subr.mxu0 0.0
    %1052 = vmatpush1.msra.mxu0 0.0
    %1053 = vmatprep.subr.mxu0 0.0
    %1054 = vmatpush1.msra.mxu0 0.0
    %1055 = vmatprep.subr.mxu0 0.0
    %1056 = vmatpush1.msra.mxu0 0.0
    %1057 = vmatprep.subr.mxu0 0.0
    %1058 = vmatpush1.msra.mxu0 0.0
    %1059 = vmatprep.subr.mxu0 0.0
    %1060 = vmatpush1.msra.mxu0 0.0
    %1061 = vmatprep.subr.mxu0 0.0
    %1062 = vmatpush1.msra.mxu0 0.0
    %1063 = vmatprep.subr.mxu0 0.0
    %1064 = vmatpush1.msra.mxu0 0.0
    %1065 = vmatprep.subr.mxu0 0.0
    %1066 = vmatpush1.msra.mxu0 0.0
    %1067 = vmatprep.subr.mxu0 0.0
    %1068 = vmatpush1.msra.mxu0 0.0
    %1069 = vmatprep.subr.mxu0 0.0
    %1070 = vmatpush1.msra.mxu0 0.0
    %1071 = vmatprep.subr.mxu0 0.0
    %1072 = vmatpush1.msra.mxu0 0.0
    %1073 = vmatprep.subr.mxu0 0.0
    %1074 = vmatpush1.msra.mxu0 0.0
    %1075 = vmatprep.subr.mxu0 0.0
    %1076 = vmatpush1.msra.mxu0 0.0
    %1077 = vmatprep.subr.mxu0 0.0
    %1078 = vmatpush1.msra.mxu0 0.0
    %1079 = vmatprep.subr.mxu0 0.0
    %1080 = vmatpush1.msra.mxu0 0.0
    %1081 = vmatprep.subr.mxu0 0.0
    %1082 = vmatpush1.msra.mxu0 0.0
    %1083 = vmatprep.subr.mxu0 0.0
    %1084 = vmatpush1.msra.mxu0 0.0
    %1085 = vmatprep.subr.mxu0 0.0
    %1086 = vmatpush1.msra.mxu0 0.0
    %1087 = vmatprep.mubr.f32.mxu0 0.0
    %1088 = vmatmul.mubr.f32.gmra.mrb[0].mxu0 %v1021
    %v1089 = vpop.f32.mrb[0].mxu0
    %v1090 = vadd.f32 0.0, %v1089
    %v1091 = vpop.f32.mrb[0].mxu0
    %1092 = vdwg.mxu0
    %1093 = vrot.lane.b32.xlu0 %v143, 56
    %v1094 = vpop.permute.xlu0 %1093
    %v1097 = vsel %vm299, %v1010, 0
    %1099 = vmatprep.subr.mxu0 0.0
    %1100 = vmatpush1.msra.mxu0 %v1094
    %1101 = vmatprep.subr.mxu0 0.0
    %1102 = vmatpush1.msra.mxu0 0.0
    %1103 = vmatprep.subr.mxu0 0.0
    %1104 = vmatpush1.msra.mxu0 0.0
    %1105 = vmatprep.subr.mxu0 0.0
    %1106 = vmatpush1.msra.mxu0 0.0
    %1107 = vmatprep.subr.mxu0 0.0
    %1108 = vmatpush1.msra.mxu0 0.0
    %1109 = vmatprep.subr.mxu0 0.0
    %1110 = vmatpush1.msra.mxu0 0.0
    %1111 = vmatprep.subr.mxu0 0.0
    %1112 = vmatpush1.msra.mxu0 0.0
    %1113 = vmatprep.subr.mxu0 0.0
    %1114 = vmatpush1.msra.mxu0 0.0
    %1115 = vmatprep.subr.mxu0 0.0
    %1116 = vmatpush1.msra.mxu0 0.0
    %1117 = vmatprep.subr.mxu0 0.0
    %1118 = vmatpush1.msra.mxu0 0.0
    %1119 = vmatprep.subr.mxu0 0.0
    %1120 = vmatpush1.msra.mxu0 0.0
    %1121 = vmatprep.subr.mxu0 0.0
    %1122 = vmatpush1.msra.mxu0 0.0
    %1123 = vmatprep.subr.mxu0 0.0
    %1124 = vmatpush1.msra.mxu0 0.0
    %1125 = vmatprep.subr.mxu0 0.0
    %1126 = vmatpush1.msra.mxu0 0.0
    %1127 = vmatprep.subr.mxu0 0.0
    %1128 = vmatpush1.msra.mxu0 0.0
    %1129 = vmatprep.subr.mxu0 0.0
    %1130 = vmatpush1.msra.mxu0 0.0
    %1131 = vmatprep.subr.mxu0 0.0
    %1132 = vmatpush1.msra.mxu0 0.0
    %1133 = vmatprep.subr.mxu0 0.0
    %1134 = vmatpush1.msra.mxu0 0.0
    %1135 = vmatprep.subr.mxu0 0.0
    %1136 = vmatpush1.msra.mxu0 0.0
    %1137 = vmatprep.subr.mxu0 0.0
    %1138 = vmatpush1.msra.mxu0 0.0
    %1139 = vmatprep.subr.mxu0 0.0
    %1140 = vmatpush1.msra.mxu0 0.0
    %1141 = vmatprep.subr.mxu0 0.0
    %1142 = vmatpush1.msra.mxu0 0.0
    %1143 = vmatprep.subr.mxu0 0.0
    %1144 = vmatpush1.msra.mxu0 0.0
    %1145 = vmatprep.subr.mxu0 0.0
    %1146 = vmatpush1.msra.mxu0 0.0
    %1147 = vmatprep.subr.mxu0 0.0
    %1148 = vmatpush1.msra.mxu0 0.0
    %1149 = vmatprep.subr.mxu0 0.0
    %1150 = vmatpush1.msra.mxu0 0.0
    %1151 = vmatprep.subr.mxu0 0.0
    %1152 = vmatpush1.msra.mxu0 0.0
    %1153 = vmatprep.subr.mxu0 0.0
    %1154 = vmatpush1.msra.mxu0 0.0
    %1155 = vmatprep.subr.mxu0 0.0
    %1156 = vmatpush1.msra.mxu0 0.0
    %1157 = vmatprep.subr.mxu0 0.0
    %1158 = vmatpush1.msra.mxu0 0.0
    %1159 = vmatprep.subr.mxu0 0.0
    %1160 = vmatpush1.msra.mxu0 0.0
    %1161 = vmatprep.subr.mxu0 0.0
    %1162 = vmatpush1.msra.mxu0 0.0
    %1163 = vmatprep.mubr.f32.mxu0 0.0
    %1164 = vmatmul.mubr.f32.gmra.mrb[0].mxu0 %v1097
    %v1165 = vpop.f32.mrb[0].mxu0
    %v1166 = vadd.f32 0.0, %v1165
    %v1167 = vpop.f32.mrb[0].mxu0
    %1168 = vdwg.mxu0
    %1169 = vrot.lane.b32.xlu0 %v143, 48
    %v1170 = vpop.permute.xlu0 %1169
    %v1173 = vsel %vm299, %v1011, 0
    %1175 = vmatprep.subr.mxu0 0.0
    %1176 = vmatpush1.msra.mxu0 %v1170
    %1177 = vmatprep.subr.mxu0 0.0
    %1178 = vmatpush1.msra.mxu0 0.0
    %1179 = vmatprep.subr.mxu0 0.0
    %1180 = vmatpush1.msra.mxu0 0.0
    %1181 = vmatprep.subr.mxu0 0.0
    %1182 = vmatpush1.msra.mxu0 0.0
    %1183 = vmatprep.subr.mxu0 0.0
    %1184 = vmatpush1.msra.mxu0 0.0
    %1185 = vmatprep.subr.mxu0 0.0
    %1186 = vmatpush1.msra.mxu0 0.0
    %1187 = vmatprep.subr.mxu0 0.0
    %1188 = vmatpush1.msra.mxu0 0.0
    %1189 = vmatprep.subr.mxu0 0.0
    %1190 = vmatpush1.msra.mxu0 0.0
    %1191 = vmatprep.subr.mxu0 0.0
    %1192 = vmatpush1.msra.mxu0 0.0
    %1193 = vmatprep.subr.mxu0 0.0
    %1194 = vmatpush1.msra.mxu0 0.0
    %1195 = vmatprep.subr.mxu0 0.0
    %1196 = vmatpush1.msra.mxu0 0.0
    %1197 = vmatprep.subr.mxu0 0.0
    %1198 = vmatpush1.msra.mxu0 0.0
    %1199 = vmatprep.subr.mxu0 0.0
    %1200 = vmatpush1.msra.mxu0 0.0
    %1201 = vmatprep.subr.mxu0 0.0
    %1202 = vmatpush1.msra.mxu0 0.0
    %1203 = vmatprep.subr.mxu0 0.0
    %1204 = vmatpush1.msra.mxu0 0.0
    %1205 = vmatprep.subr.mxu0 0.0
    %1206 = vmatpush1.msra.mxu0 0.0
    %1207 = vmatprep.subr.mxu0 0.0
    %1208 = vmatpush1.msra.mxu0 0.0
    %1209 = vmatprep.subr.mxu0 0.0
    %1210 = vmatpush1.msra.mxu0 0.0
    %1211 = vmatprep.subr.mxu0 0.0
    %1212 = vmatpush1.msra.mxu0 0.0
    %1213 = vmatprep.subr.mxu0 0.0
    %1214 = vmatpush1.msra.mxu0 0.0
    %1215 = vmatprep.subr.mxu0 0.0
    %1216 = vmatpush1.msra.mxu0 0.0
    %1217 = vmatprep.subr.mxu0 0.0
    %1218 = vmatpush1.msra.mxu0 0.0
    %1219 = vmatprep.subr.mxu0 0.0
    %1220 = vmatpush1.msra.mxu0 0.0
    %1221 = vmatprep.subr.mxu0 0.0
    %1222 = vmatpush1.msra.mxu0 0.0
    %1223 = vmatprep.subr.mxu0 0.0
    %1224 = vmatpush1.msra.mxu0 0.0
    %1225 = vmatprep.subr.mxu0 0.0
    %1226 = vmatpush1.msra.mxu0 0.0
    %1227 = vmatprep.subr.mxu0 0.0
    %1228 = vmatpush1.msra.mxu0 0.0
    %1229 = vmatprep.subr.mxu0 0.0
    %1230 = vmatpush1.msra.mxu0 0.0
    %1231 = vmatprep.subr.mxu0 0.0
    %1232 = vmatpush1.msra.mxu0 0.0
    %1233 = vmatprep.subr.mxu0 0.0
    %1234 = vmatpush1.msra.mxu0 0.0
    %1235 = vmatprep.subr.mxu0 0.0
    %1236 = vmatpush1.msra.mxu0 0.0
    %1237 = vmatprep.subr.mxu0 0.0
    %1238 = vmatpush1.msra.mxu0 0.0
    %1239 = vmatprep.mubr.f32.mxu0 0.0
    %1240 = vmatmul.mubr.f32.gmra.mrb[0].mxu0 %v1173
    %v1241 = vpop.f32.mrb[0].mxu0
    %v1242 = vadd.f32 0.0, %v1241
    %v1243 = vpop.f32.mrb[0].mxu0
    %1244 = vdwg.mxu0
    %1245 = vrot.lane.b32.xlu0 %v143, 40
    %v1246 = vpop.permute.xlu0 %1245
    %v1249 = vsel %vm299, %v1012, 0
    %1251 = vmatprep.subr.mxu0 0.0
    %1252 = vmatpush1.msra.mxu0 %v1246
    %1253 = vmatprep.subr.mxu0 0.0
    %1254 = vmatpush1.msra.mxu0 0.0
    %1255 = vmatprep.subr.mxu0 0.0
    %1256 = vmatpush1.msra.mxu0 0.0
    %1257 = vmatprep.subr.mxu0 0.0
    %1258 = vmatpush1.msra.mxu0 0.0
    %1259 = vmatprep.subr.mxu0 0.0
    %1260 = vmatpush1.msra.mxu0 0.0
    %1261 = vmatprep.subr.mxu0 0.0
    %1262 = vmatpush1.msra.mxu0 0.0
    %1263 = vmatprep.subr.mxu0 0.0
    %1264 = vmatpush1.msra.mxu0 0.0
    %1265 = vmatprep.subr.mxu0 0.0
    %1266 = vmatpush1.msra.mxu0 0.0
    %1267 = vmatprep.subr.mxu0 0.0
    %1268 = vmatpush1.msra.mxu0 0.0
    %1269 = vmatprep.subr.mxu0 0.0
    %1270 = vmatpush1.msra.mxu0 0.0
    %1271 = vmatprep.subr.mxu0 0.0
    %1272 = vmatpush1.msra.mxu0 0.0
    %1273 = vmatprep.subr.mxu0 0.0
    %1274 = vmatpush1.msra.mxu0 0.0
    %1275 = vmatprep.subr.mxu0 0.0
    %1276 = vmatpush1.msra.mxu0 0.0
    %1277 = vmatprep.subr.mxu0 0.0
    %1278 = vmatpush1.msra.mxu0 0.0
    %1279 = vmatprep.subr.mxu0 0.0
    %1280 = vmatpush1.msra.mxu0 0.0
    %1281 = vmatprep.subr.mxu0 0.0
    %1282 = vmatpush1.msra.mxu0 0.0
    %1283 = vmatprep.subr.mxu0 0.0
    %1284 = vmatpush1.msra.mxu0 0.0
    %1285 = vmatprep.subr.mxu0 0.0
    %1286 = vmatpush1.msra.mxu0 0.0
    %1287 = vmatprep.subr.mxu0 0.0
    %1288 = vmatpush1.msra.mxu0 0.0
    %1289 = vmatprep.subr.mxu0 0.0
    %1290 = vmatpush1.msra.mxu0 0.0
    %1291 = vmatprep.subr.mxu0 0.0
    %1292 = vmatpush1.msra.mxu0 0.0
    %1293 = vmatprep.subr.mxu0 0.0
    %1294 = vmatpush1.msra.mxu0 0.0
    %1295 = vmatprep.subr.mxu0 0.0
    %1296 = vmatpush1.msra.mxu0 0.0
    %1297 = vmatprep.subr.mxu0 0.0
    %1298 = vmatpush1.msra.mxu0 0.0
    %1299 = vmatprep.subr.mxu0 0.0
    %1300 = vmatpush1.msra.mxu0 0.0
    %1301 = vmatprep.subr.mxu0 0.0
    %1302 = vmatpush1.msra.mxu0 0.0
    %1303 = vmatprep.subr.mxu0 0.0
    %1304 = vmatpush1.msra.mxu0 0.0
    %1305 = vmatprep.subr.mxu0 0.0
    %1306 = vmatpush1.msra.mxu0 0.0
    %1307 = vmatprep.subr.mxu0 0.0
    %1308 = vmatpush1.msra.mxu0 0.0
    %1309 = vmatprep.subr.mxu0 0.0
    %1310 = vmatpush1.msra.mxu0 0.0
    %1311 = vmatprep.subr.mxu0 0.0
    %1312 = vmatpush1.msra.mxu0 0.0
    %1313 = vmatprep.subr.mxu0 0.0
    %1314 = vmatpush1.msra.mxu0 0.0
    %1315 = vmatprep.mubr.f32.mxu0 0.0
    %1316 = vmatmul.mubr.f32.gmra.mrb[0].mxu0 %v1249
    %v1317 = vpop.f32.mrb[0].mxu0
    %v1318 = vadd.f32 0.0, %v1317
    %v1319 = vpop.f32.mrb[0].mxu0
    %1320 = vdwg.mxu0
    %1322 = vrot.lane.b32.xlu0 %v1166, 8
    %v1323 = vpop.permute.xlu0 %1322
    %1326 = vrot.lane.b32.xlu0 %v1242, 16
    %v1327 = vpop.permute.xlu0 %1326
    %1330 = vrot.lane.b32.xlu0 %v1318, 24
    %v1331 = vpop.permute.xlu0 %1330
    %v1333 = vsel %vm299, %v1090, %v1323
    %v1334 = vsel %vm104, %v1333, %v1327
    %vm1335 = vcmask 195584
    %v1336 = vsel %vm1335, %v1334, %v1331
    %1337 = vrot.lane.b32.xlu0 %v146, 64
    %v1338 = vpop.permute.xlu0 %1337
    %v1341 = vsel %vm299, %v1013, 0
    %1343 = vmatprep.subr.mxu0 0.0
    %1344 = vmatpush1.msra.mxu0 %v1338
    %1345 = vmatprep.subr.mxu0 0.0
    %1346 = vmatpush1.msra.mxu0 0.0
    %1347 = vmatprep.subr.mxu0 0.0
    %1348 = vmatpush1.msra.mxu0 0.0
    %1349 = vmatprep.subr.mxu0 0.0
    %1350 = vmatpush1.msra.mxu0 0.0
    %1351 = vmatprep.subr.mxu0 0.0
    %1352 = vmatpush1.msra.mxu0 0.0
    %1353 = vmatprep.subr.mxu0 0.0
    %1354 = vmatpush1.msra.mxu0 0.0
    %1355 = vmatprep.subr.mxu0 0.0
    %1356 = vmatpush1.msra.mxu0 0.0
    %1357 = vmatprep.subr.mxu0 0.0
    %1358 = vmatpush1.msra.mxu0 0.0
    %1359 = vmatprep.subr.mxu0 0.0
    %1360 = vmatpush1.msra.mxu0 0.0
    %1361 = vmatprep.subr.mxu0 0.0
    %1362 = vmatpush1.msra.mxu0 0.0
    %1363 = vmatprep.subr.mxu0 0.0
    %1364 = vmatpush1.msra.mxu0 0.0
    %1365 = vmatprep.subr.mxu0 0.0
    %1366 = vmatpush1.msra.mxu0 0.0
    %1367 = vmatprep.subr.mxu0 0.0
    %1368 = vmatpush1.msra.mxu0 0.0
    %1369 = vmatprep.subr.mxu0 0.0
    %1370 = vmatpush1.msra.mxu0 0.0
    %1371 = vmatprep.subr.mxu0 0.0
    %1372 = vmatpush1.msra.mxu0 0.0
    %1373 = vmatprep.subr.mxu0 0.0
    %1374 = vmatpush1.msra.mxu0 0.0
    %1375 = vmatprep.subr.mxu0 0.0
    %1376 = vmatpush1.msra.mxu0 0.0
    %1377 = vmatprep.subr.mxu0 0.0
    %1378 = vmatpush1.msra.mxu0 0.0
    %1379 = vmatprep.subr.mxu0 0.0
    %1380 = vmatpush1.msra.mxu0 0.0
    %1381 = vmatprep.subr.mxu0 0.0
    %1382 = vmatpush1.msra.mxu0 0.0
    %1383 = vmatprep.subr.mxu0 0.0
    %1384 = vmatpush1.msra.mxu0 0.0
    %1385 = vmatprep.subr.mxu0 0.0
    %1386 = vmatpush1.msra.mxu0 0.0
    %1387 = vmatprep.subr.mxu0 0.0
    %1388 = vmatpush1.msra.mxu0 0.0
    %1389 = vmatprep.subr.mxu0 0.0
    %1390 = vmatpush1.msra.mxu0 0.0
    %1391 = vmatprep.subr.mxu0 0.0
    %1392 = vmatpush1.msra.mxu0 0.0
    %1393 = vmatprep.subr.mxu0 0.0
    %1394 = vmatpush1.msra.mxu0 0.0
    %1395 = vmatprep.subr.mxu0 0.0
    %1396 = vmatpush1.msra.mxu0 0.0
    %1397 = vmatprep.subr.mxu0 0.0
    %1398 = vmatpush1.msra.mxu0 0.0
    %1399 = vmatprep.subr.mxu0 0.0
    %1400 = vmatpush1.msra.mxu0 0.0
    %1401 = vmatprep.subr.mxu0 0.0
    %1402 = vmatpush1.msra.mxu0 0.0
    %1403 = vmatprep.subr.mxu0 0.0
    %1404 = vmatpush1.msra.mxu0 0.0
    %1405 = vmatprep.subr.mxu0 0.0
    %1406 = vmatpush1.msra.mxu0 0.0
    %1407 = vmatprep.mubr.f32.mxu0 0.0
    %1408 = vmatmul.mubr.f32.gmra.mrb[0].mxu0 %v1341
    %v1409 = vpop.f32.mrb[0].mxu0
    %v1410 = vadd.f32 0.0, %v1409
    %v1411 = vpop.f32.mrb[0].mxu0
    %1412 = vdwg.mxu0
    %1413 = vrot.lane.b32.xlu0 %v146, 56
    %v1414 = vpop.permute.xlu0 %1413
    %v1417 = vsel %vm299, %v1014, 0
    %1419 = vmatprep.subr.mxu0 0.0
    %1420 = vmatpush1.msra.mxu0 %v1414
    %1421 = vmatprep.subr.mxu0 0.0
    %1422 = vmatpush1.msra.mxu0 0.0
    %1423 = vmatprep.subr.mxu0 0.0
    %1424 = vmatpush1.msra.mxu0 0.0
    %1425 = vmatprep.subr.mxu0 0.0
    %1426 = vmatpush1.msra.mxu0 0.0
    %1427 = vmatprep.subr.mxu0 0.0
    %1428 = vmatpush1.msra.mxu0 0.0
    %1429 = vmatprep.subr.mxu0 0.0
    %1430 = vmatpush1.msra.mxu0 0.0
    %1431 = vmatprep.subr.mxu0 0.0
    %1432 = vmatpush1.msra.mxu0 0.0
    %1433 = vmatprep.subr.mxu0 0.0
    %1434 = vmatpush1.msra.mxu0 0.0
    %1435 = vmatprep.subr.mxu0 0.0
    %1436 = vmatpush1.msra.mxu0 0.0
    %1437 = vmatprep.subr.mxu0 0.0
    %1438 = vmatpush1.msra.mxu0 0.0
    %1439 = vmatprep.subr.mxu0 0.0
    %1440 = vmatpush1.msra.mxu0 0.0
    %1441 = vmatprep.subr.mxu0 0.0
    %1442 = vmatpush1.msra.mxu0 0.0
    %1443 = vmatprep.subr.mxu0 0.0
    %1444 = vmatpush1.msra.mxu0 0.0
    %1445 = vmatprep.subr.mxu0 0.0
    %1446 = vmatpush1.msra.mxu0 0.0
    %1447 = vmatprep.subr.mxu0 0.0
    %1448 = vmatpush1.msra.mxu0 0.0
    %1449 = vmatprep.subr.mxu0 0.0
    %1450 = vmatpush1.msra.mxu0 0.0
    %1451 = vmatprep.subr.mxu0 0.0
    %1452 = vmatpush1.msra.mxu0 0.0
    %1453 = vmatprep.subr.mxu0 0.0
    %1454 = vmatpush1.msra.mxu0 0.0
    %1455 = vmatprep.subr.mxu0 0.0
    %1456 = vmatpush1.msra.mxu0 0.0
    %1457 = vmatprep.subr.mxu0 0.0
    %1458 = vmatpush1.msra.mxu0 0.0
    %1459 = vmatprep.subr.mxu0 0.0
    %1460 = vmatpush1.msra.mxu0 0.0
    %1461 = vmatprep.subr.mxu0 0.0
    %1462 = vmatpush1.msra.mxu0 0.0
    %1463 = vmatprep.subr.mxu0 0.0
    %1464 = vmatpush1.msra.mxu0 0.0
    %1465 = vmatprep.subr.mxu0 0.0
    %1466 = vmatpush1.msra.mxu0 0.0
    %1467 = vmatprep.subr.mxu0 0.0
    %1468 = vmatpush1.msra.mxu0 0.0
    %1469 = vmatprep.subr.mxu0 0.0
    %1470 = vmatpush1.msra.mxu0 0.0
    %1471 = vmatprep.subr.mxu0 0.0
    %1472 = vmatpush1.msra.mxu0 0.0
    %1473 = vmatprep.subr.mxu0 0.0
    %1474 = vmatpush1.msra.mxu0 0.0
    %1475 = vmatprep.subr.mxu0 0.0
    %1476 = vmatpush1.msra.mxu0 0.0
    %1477 = vmatprep.subr.mxu0 0.0
    %1478 = vmatpush1.msra.mxu0 0.0
    %1479 = vmatprep.subr.mxu0 0.0
    %1480 = vmatpush1.msra.mxu0 0.0
    %1481 = vmatprep.subr.mxu0 0.0
    %1482 = vmatpush1.msra.mxu0 0.0
    %1483 = vmatprep.mubr.f32.mxu0 0.0
    %1484 = vmatmul.mubr.f32.gmra.mrb[0].mxu0 %v1417
    %v1485 = vpop.f32.mrb[0].mxu0
    %v1486 = vadd.f32 0.0, %v1485
    %v1487 = vpop.f32.mrb[0].mxu0
    %1488 = vdwg.mxu0
    %1489 = vrot.lane.b32.xlu0 %v146, 48
    %v1490 = vpop.permute.xlu0 %1489
    %v1493 = vsel %vm299, %v1015, 0
    %1495 = vmatprep.subr.mxu0 0.0
    %1496 = vmatpush1.msra.mxu0 %v1490
    %1497 = vmatprep.subr.mxu0 0.0
    %1498 = vmatpush1.msra.mxu0 0.0
    %1499 = vmatprep.subr.mxu0 0.0
    %1500 = vmatpush1.msra.mxu0 0.0
    %1501 = vmatprep.subr.mxu0 0.0
    %1502 = vmatpush1.msra.mxu0 0.0
    %1503 = vmatprep.subr.mxu0 0.0
    %1504 = vmatpush1.msra.mxu0 0.0
    %1505 = vmatprep.subr.mxu0 0.0
    %1506 = vmatpush1.msra.mxu0 0.0
    %1507 = vmatprep.subr.mxu0 0.0
    %1508 = vmatpush1.msra.mxu0 0.0
    %1509 = vmatprep.subr.mxu0 0.0
    %1510 = vmatpush1.msra.mxu0 0.0
    %1511 = vmatprep.subr.mxu0 0.0
    %1512 = vmatpush1.msra.mxu0 0.0
    %1513 = vmatprep.subr.mxu0 0.0
    %1514 = vmatpush1.msra.mxu0 0.0
    %1515 = vmatprep.subr.mxu0 0.0
    %1516 = vmatpush1.msra.mxu0 0.0
    %1517 = vmatprep.subr.mxu0 0.0
    %1518 = vmatpush1.msra.mxu0 0.0
    %1519 = vmatprep.subr.mxu0 0.0
    %1520 = vmatpush1.msra.mxu0 0.0
    %1521 = vmatprep.subr.mxu0 0.0
    %1522 = vmatpush1.msra.mxu0 0.0
    %1523 = vmatprep.subr.mxu0 0.0
    %1524 = vmatpush1.msra.mxu0 0.0
    %1525 = vmatprep.subr.mxu0 0.0
    %1526 = vmatpush1.msra.mxu0 0.0
    %1527 = vmatprep.subr.mxu0 0.0
    %1528 = vmatpush1.msra.mxu0 0.0
    %1529 = vmatprep.subr.mxu0 0.0
    %1530 = vmatpush1.msra.mxu0 0.0
    %1531 = vmatprep.subr.mxu0 0.0
    %1532 = vmatpush1.msra.mxu0 0.0
    %1533 = vmatprep.subr.mxu0 0.0
    %1534 = vmatpush1.msra.mxu0 0.0
    %1535 = vmatprep.subr.mxu0 0.0
    %1536 = vmatpush1.msra.mxu0 0.0
    %1537 = vmatprep.subr.mxu0 0.0
    %1538 = vmatpush1.msra.mxu0 0.0
    %1539 = vmatprep.subr.mxu0 0.0
    %1540 = vmatpush1.msra.mxu0 0.0
    %1541 = vmatprep.subr.mxu0 0.0
    %1542 = vmatpush1.msra.mxu0 0.0
    %1543 = vmatprep.subr.mxu0 0.0
    %1544 = vmatpush1.msra.mxu0 0.0
    %1545 = vmatprep.subr.mxu0 0.0
    %1546 = vmatpush1.msra.mxu0 0.0
    %1547 = vmatprep.subr.mxu0 0.0
    %1548 = vmatpush1.msra.mxu0 0.0
    %1549 = vmatprep.subr.mxu0 0.0
    %1550 = vmatpush1.msra.mxu0 0.0
    %1551 = vmatprep.subr.mxu0 0.0
    %1552 = vmatpush1.msra.mxu0 0.0
    %1553 = vmatprep.subr.mxu0 0.0
    %1554 = vmatpush1.msra.mxu0 0.0
    %1555 = vmatprep.subr.mxu0 0.0
    %1556 = vmatpush1.msra.mxu0 0.0
    %1557 = vmatprep.subr.mxu0 0.0
    %1558 = vmatpush1.msra.mxu0 0.0
    %1559 = vmatprep.mubr.f32.mxu0 0.0
    %1560 = vmatmul.mubr.f32.gmra.mrb[0].mxu0 %v1493
    %v1561 = vpop.f32.mrb[0].mxu0
    %v1562 = vadd.f32 0.0, %v1561
    %v1563 = vpop.f32.mrb[0].mxu0
    %1564 = vdwg.mxu0
    %1565 = vrot.lane.b32.xlu0 %v146, 40
    %v1566 = vpop.permute.xlu0 %1565
    %v1569 = vsel %vm299, %v1016, 0
    %1571 = vmatprep.subr.mxu0 0.0
    %1572 = vmatpush1.msra.mxu0 %v1566
    %1573 = vmatprep.subr.mxu0 0.0
    %1574 = vmatpush1.msra.mxu0 0.0
    %1575 = vmatprep.subr.mxu0 0.0
    %1576 = vmatpush1.msra.mxu0 0.0
    %1577 = vmatprep.subr.mxu0 0.0
    %1578 = vmatpush1.msra.mxu0 0.0
    %1579 = vmatprep.subr.mxu0 0.0
    %1580 = vmatpush1.msra.mxu0 0.0
    %1581 = vmatprep.subr.mxu0 0.0
    %1582 = vmatpush1.msra.mxu0 0.0
    %1583 = vmatprep.subr.mxu0 0.0
    %1584 = vmatpush1.msra.mxu0 0.0
    %1585 = vmatprep.subr.mxu0 0.0
    %1586 = vmatpush1.msra.mxu0 0.0
    %1587 = vmatprep.subr.mxu0 0.0
    %1588 = vmatpush1.msra.mxu0 0.0
    %1589 = vmatprep.subr.mxu0 0.0
    %1590 = vmatpush1.msra.mxu0 0.0
    %1591 = vmatprep.subr.mxu0 0.0
    %1592 = vmatpush1.msra.mxu0 0.0
    %1593 = vmatprep.subr.mxu0 0.0
    %1594 = vmatpush1.msra.mxu0 0.0
    %1595 = vmatprep.subr.mxu0 0.0
    %1596 = vmatpush1.msra.mxu0 0.0
    %1597 = vmatprep.subr.mxu0 0.0
    %1598 = vmatpush1.msra.mxu0 0.0
    %1599 = vmatprep.subr.mxu0 0.0
    %1600 = vmatpush1.msra.mxu0 0.0
    %1601 = vmatprep.subr.mxu0 0.0
    %1602 = vmatpush1.msra.mxu0 0.0
    %1603 = vmatprep.subr.mxu0 0.0
    %1604 = vmatpush1.msra.mxu0 0.0
    %1605 = vmatprep.subr.mxu0 0.0
    %1606 = vmatpush1.msra.mxu0 0.0
    %1607 = vmatprep.subr.mxu0 0.0
    %1608 = vmatpush1.msra.mxu0 0.0
    %1609 = vmatprep.subr.mxu0 0.0
    %1610 = vmatpush1.msra.mxu0 0.0
    %1611 = vmatprep.subr.mxu0 0.0
    %1612 = vmatpush1.msra.mxu0 0.0
    %1613 = vmatprep.subr.mxu0 0.0
    %1614 = vmatpush1.msra.mxu0 0.0
    %1615 = vmatprep.subr.mxu0 0.0
    %1616 = vmatpush1.msra.mxu0 0.0
    %1617 = vmatprep.subr.mxu0 0.0
    %1618 = vmatpush1.msra.mxu0 0.0
    %1619 = vmatprep.subr.mxu0 0.0
    %1620 = vmatpush1.msra.mxu0 0.0
    %1621 = vmatprep.subr.mxu0 0.0
    %1622 = vmatpush1.msra.mxu0 0.0
    %1623 = vmatprep.subr.mxu0 0.0
    %1624 = vmatpush1.msra.mxu0 0.0
    %1625 = vmatprep.subr.mxu0 0.0
    %1626 = vmatpush1.msra.mxu0 0.0
    %1627 = vmatprep.subr.mxu0 0.0
    %1628 = vmatpush1.msra.mxu0 0.0
    %1629 = vmatprep.subr.mxu0 0.0
    %1630 = vmatpush1.msra.mxu0 0.0
    %1631 = vmatprep.subr.mxu0 0.0
    %1632 = vmatpush1.msra.mxu0 0.0
    %1633 = vmatprep.subr.mxu0 0.0
    %1634 = vmatpush1.msra.mxu0 0.0
    %1635 = vmatprep.mubr.f32.mxu0 0.0
    %1636 = vmatmul.mubr.f32.gmra.mrb[0].mxu0 %v1569
    %v1637 = vpop.f32.mrb[0].mxu0
    %v1638 = vadd.f32 0.0, %v1637
    %v1639 = vpop.f32.mrb[0].mxu0
    %1640 = vdwg.mxu0
    %1642 = vrot.lane.b32.xlu0 %v1486, 8
    %v1643 = vpop.permute.xlu0 %1642
    %1646 = vrot.lane.b32.xlu0 %v1562, 16
    %v1647 = vpop.permute.xlu0 %1646
    %1650 = vrot.lane.b32.xlu0 %v1638, 24
    %v1651 = vpop.permute.xlu0 %1650
    %v1653 = vsel %vm299, %v1410, %v1643
    %v1654 = vsel %vm104, %v1653, %v1647
    %v1655 = vsel %vm1335, %v1654, %v1651
    %v1656 = vpack.c.bf16 %v1655, %v1336
    %v1657 = vlaneseq
    %v1658 = vshrl.u32 %v1657, 7
    %v1659 = vsub.s32 0, %v1658
    %v1660 = vrot.slane %v90, %v1659
    %v1665 = vunpack.c.l.b16 %v86
    %v1666 = vunpack.c.l.b16 %v87
    %v1667 = vunpack.c.l.b16 %v88
    %v1668 = vunpack.c.l.b16 %v89
    %v1669 = vpack.c.b16 %v1666, %v1665
    %v1670 = vpack.c.b16 %v1668, %v1667
    %vm1673 = vcmask 261120
    %v1675 = vsel %vm1673, %v1656, 0
    %1677 = vmatprep.subr.bf16.mxu0 0
    %1678 = vmatpush1.bf16.msra.mxu0 %v1669
    %1679 = vmatprep.subr.bf16.mxu0 0
    %1680 = vmatpush1.bf16.msra.mxu0 %v1670
    %1681 = vmatprep.subr.bf16.mxu0 0
    %1682 = vmatpush1.bf16.msra.mxu0 0
    %1683 = vmatprep.subr.bf16.mxu0 0
    %1684 = vmatpush1.bf16.msra.mxu0 0
    %1685 = vmatprep.subr.bf16.mxu0 0
    %1686 = vmatpush1.bf16.msra.mxu0 0
    %1687 = vmatprep.subr.bf16.mxu0 0
    %1688 = vmatpush1.bf16.msra.mxu0 0
    %1689 = vmatprep.subr.bf16.mxu0 0
    %1690 = vmatpush1.bf16.msra.mxu0 0
    %1691 = vmatprep.subr.bf16.mxu0 0
    %1692 = vmatpush1.bf16.msra.mxu0 0
    %1693 = vmatprep.subr.bf16.mxu0 0
    %1694 = vmatpush1.bf16.msra.mxu0 0
    %1695 = vmatprep.subr.bf16.mxu0 0
    %1696 = vmatpush1.bf16.msra.mxu0 0
    %1697 = vmatprep.subr.bf16.mxu0 0
    %1698 = vmatpush1.bf16.msra.mxu0 0
    %1699 = vmatprep.subr.bf16.mxu0 0
    %1700 = vmatpush1.bf16.msra.mxu0 0
    %1701 = vmatprep.subr.bf16.mxu0 0
    %1702 = vmatpush1.bf16.msra.mxu0 0
    %1703 = vmatprep.subr.bf16.mxu0 0
    %1704 = vmatpush1.bf16.msra.mxu0 0
    %1705 = vmatprep.subr.bf16.mxu0 0
    %1706 = vmatpush1.bf16.msra.mxu0 0
    %1707 = vmatprep.subr.bf16.mxu0 0
    %1708 = vmatpush1.bf16.msra.mxu0 0
    %1709 = vmatprep.mubr.bf16.mxu0 0
    %1710 = vmatmul.mubr.bf16.gmra.mrb[0].mxu0 %v1675
    %v1711 = vpop.f32.mrb[0].mxu0
    %v1712 = vadd.f32 %v1660, %v1711
    %v1713 = vpop.f32.mrb[0].mxu0
    %v1714 = vpop.f32.mrb[0].mxu0
    %v1715 = vadd.f32 %v1660, %v1714
    %v1716 = vpop.f32.mrb[0].mxu0
    %1717 = vdwg.mxu0
    %v1718 = vadd.f32 %v60, %v1712
    %v1719 = vadd.f32 %v61, %v1715
    %v1720 = vsel %vm104, %v1718, 0.0
    %1721 = vadd.xlane.f32.xlu0 %v1720
    %v1722 = vpop.xlane.xlu0 %1721
    %v1723 = vsel %vm104, %v1719, 0.0
    %1724 = vadd.xlane.f32.xlu0 %v1723
    %v1725 = vpop.xlane.xlu0 %1724
    %v1726 = vrcp.pop 16.0
    %v1727 = vmul.f32 %v1722, %v1726
    %v1728 = vmul.f32 %v1725, %v1726
    %v1729 = vsub.f32 %v1718, %v1727
    %v1730 = vsub.f32 %v1719, %v1728
    %v1731 = vmul.f32 %v1729, %v1729
    %v1732 = vmul.f32 %v1730, %v1730
    %v1733 = vsel %vm104, %v1731, 0.0
    %1734 = vadd.xlane.f32.xlu0 %v1733
    %v1735 = vpop.xlane.xlu0 %1734
    %v1736 = vsel %vm104, %v1732, 0.0
    %1737 = vadd.xlane.f32.xlu0 %v1736
    %v1738 = vpop.xlane.xlu0 %1737
    %v1739 = vmul.f32 %v1735, %v1726
    %v1740 = vmul.f32 %v1738, %v1726
    %v1741 = vadd.f32 %v1739, 1e-05
    %v1742 = vadd.f32 %v1740, 1e-05
    %v1743 = vrsqrt.pop %v1741
    %v1744 = vrsqrt.pop %v1742
    %v1745 = vmul.f32 %v1729, %v1743
    %v1746 = vmul.f32 %v1730, %v1744
    %v1747 = vlaneseq
    %v1748 = vshrl.u32 %v1747, 7
    %v1749 = vsub.s32 0, %v1748
    %v1750 = vrot.slane %v91, %v1749
    %v1751 = vmul.f32 %v1745, %v1750
    %v1752 = vmul.f32 %v1746, %v1750
    %v1753 = vlaneseq
    %v1754 = vshrl.u32 %v1753, 7
    %v1755 = vsub.s32 0, %v1754
    %v1756 = vrot.slane %v92, %v1755
    %v1757 = vadd.f32 %v1751, %v1756
    %v1758 = vadd.f32 %v1752, %v1756
    %v1759 = vpack.c.bf16 %v1758, %v1757
    %v1760 = vlaneseq
    %v1761 = vshrl.u32 %v1760, 7
    %v1762 = vsub.s32 0, %v1761
    %v1763 = vrot.slane %v93, %v1762
    %v1766 = vunpack.c.l.b16 %v80
    %v1767 = vunpack.c.l.b16 %v81
    %v1768 = vpack.c.b16 %v1767, %v1766
    %v1771 = vsel %vm104, %v1759, 0
    %1773 = vmatprep.subr.bf16.mxu0 0
    %1774 = vmatpush1.bf16.msra.mxu0 %v1768
    %1775 = vmatprep.subr.bf16.mxu0 0
    %1776 = vmatpush1.bf16.msra.mxu0 0
    %1777 = vmatprep.subr.bf16.mxu0 0
    %1778 = vmatpush1.bf16.msra.mxu0 0
    %1779 = vmatprep.subr.bf16.mxu0 0
    %1780 = vmatpush1.bf16.msra.mxu0 0
    %1781 = vmatprep.subr.bf16.mxu0 0
    %1782 = vmatpush1.bf16.msra.mxu0 0
    %1783 = vmatprep.subr.bf16.mxu0 0
    %1784 = vmatpush1.bf16.msra.mxu0 0
    %1785 = vmatprep.subr.bf16.mxu0 0
    %1786 = vmatpush1.bf16.msra.mxu0 0
    %1787 = vmatprep.subr.bf16.mxu0 0
    %1788 = vmatpush1.bf16.msra.mxu0 0
    %1789 = vmatprep.subr.bf16.mxu0 0
    %1790 = vmatpush1.bf16.msra.mxu0 0
    %1791 = vmatprep.subr.bf16.mxu0 0
    %1792 = vmatpush1.bf16.msra.mxu0 0
    %1793 = vmatprep.subr.bf16.mxu0 0
    %1794 = vmatpush1.bf16.msra.mxu0 0
    %1795 = vmatprep.subr.bf16.mxu0 0
    %1796 = vmatpush1.bf16.msra.mxu0 0
    %1797 = vmatprep.subr.bf16.mxu0 0
    %1798 = vmatpush1.bf16.msra.mxu0 0
    %1799 = vmatprep.subr.bf16.mxu0 0
    %1800 = vmatpush1.bf16.msra.mxu0 0
    %1801 = vmatprep.subr.bf16.mxu0 0
    %1802 = vmatpush1.bf16.msra.mxu0 0
    %1803 = vmatprep.subr.bf16.mxu0 0
    %1804 = vmatpush1.bf16.msra.mxu0 0
    %1805 = vmatprep.mubr.bf16.mxu0 0
    %1806 = vmatmul.mubr.bf16.gmra.mrb[0].mxu0 %v1771
    %v1807 = vpop.f32.mrb[0].mxu0
    %v1808 = vadd.f32 %v1763, %v1807
    %v1809 = vpop.f32.mrb[0].mxu0
    %v1810 = vpop.f32.mrb[0].mxu0
    %v1811 = vadd.f32 %v1763, %v1810
    %v1812 = vpop.f32.mrb[0].mxu0
    %1813 = vdwg.mxu0
    %v1814 = vmax.f32 %v1808, 0.0
    %v1815 = vmax.f32 %v1811, 0.0
    %v1816 = vpack.c.bf16 %v1815, %v1814
    %v1817 = vlaneseq
    %v1818 = vshrl.u32 %v1817, 7
    %v1819 = vsub.s32 0, %v1818
    %v1820 = vrot.slane %v94, %v1819
    %v1825 = vunpack.c.l.b16 %v82
    %v1826 = vunpack.c.l.b16 %v83
    %v1827 = vunpack.c.l.b16 %v84
    %v1828 = vunpack.c.l.b16 %v85
    %v1829 = vpack.c.b16 %v1826, %v1825
    %v1830 = vpack.c.b16 %v1828, %v1827
    %v1834 = vsel %vm1673, %v1816, 0
    %1836 = vmatprep.subr.bf16.mxu0 0
    %1837 = vmatpush1.bf16.msra.mxu0 %v1829
    %1838 = vmatprep.subr.bf16.mxu0 0
    %1839 = vmatpush1.bf16.msra.mxu0 %v1830
    %1840 = vmatprep.subr.bf16.mxu0 0
    %1841 = vmatpush1.bf16.msra.mxu0 0
    %1842 = vmatprep.subr.bf16.mxu0 0
    %1843 = vmatpush1.bf16.msra.mxu0 0
    %1844 = vmatprep.subr.bf16.mxu0 0
    %1845 = vmatpush1.bf16.msra.mxu0 0
    %1846 = vmatprep.subr.bf16.mxu0 0
    %1847 = vmatpush1.bf16.msra.mxu0 0
    %1848 = vmatprep.subr.bf16.mxu0 0
    %1849 = vmatpush1.bf16.msra.mxu0 0
    %1850 = vmatprep.subr.bf16.mxu0 0
    %1851 = vmatpush1.bf16.msra.mxu0 0
    %1852 = vmatprep.subr.bf16.mxu0 0
    %1853 = vmatpush1.bf16.msra.mxu0 0
    %1854 = vmatprep.subr.bf16.mxu0 0
    %1855 = vmatpush1.bf16.msra.mxu0 0
    %1856 = vmatprep.subr.bf16.mxu0 0
    %1857 = vmatpush1.bf16.msra.mxu0 0
    %1858 = vmatprep.subr.bf16.mxu0 0
    %1859 = vmatpush1.bf16.msra.mxu0 0
    %1860 = vmatprep.subr.bf16.mxu0 0
    %1861 = vmatpush1.bf16.msra.mxu0 0
    %1862 = vmatprep.subr.bf16.mxu0 0
    %1863 = vmatpush1.bf16.msra.mxu0 0
    %1864 = vmatprep.subr.bf16.mxu0 0
    %1865 = vmatpush1.bf16.msra.mxu0 0
    %1866 = vmatprep.subr.bf16.mxu0 0
    %1867 = vmatpush1.bf16.msra.mxu0 0
    %1868 = vmatprep.mubr.bf16.mxu0 0
    %1869 = vmatmul.mubr.bf16.gmra.mrb[0].mxu0 %v1834
    %v1870 = vpop.f32.mrb[0].mxu0
    %v1871 = vadd.f32 %v1820, %v1870
    %v1872 = vpop.f32.mrb[0].mxu0
    %v1873 = vpop.f32.mrb[0].mxu0
    %v1874 = vadd.f32 %v1820, %v1873
    %v1875 = vpop.f32.mrb[0].mxu0
    %1876 = vdwg.mxu0
    %v1877 = vadd.f32 %v1757, %v1871
    %v1878 = vadd.f32 %v1758, %v1874
    %v1879 = vsel %vm104, %v1877, 0.0
    %1880 = vadd.xlane.f32.xlu0 %v1879
    %v1881 = vpop.xlane.xlu0 %1880
    %v1882 = vsel %vm104, %v1878, 0.0
    %1883 = vadd.xlane.f32.xlu0 %v1882
    %v1884 = vpop.xlane.xlu0 %1883
    %v1885 = vmul.f32 %v1881, %v1726
    %v1886 = vmul.f32 %v1884, %v1726
    %v1887 = vsub.f32 %v1877, %v1885
    %v1888 = vsub.f32 %v1878, %v1886
    %v1889 = vmul.f32 %v1887, %v1887
    %v1890 = vmul.f32 %v1888, %v1888
    %v1891 = vsel %vm104, %v1889, 0.0
    %1892 = vadd.xlane.f32.xlu0 %v1891
    %v1893 = vpop.xlane.xlu0 %1892
    %v1894 = vsel %vm104, %v1890, 0.0
    %1895 = vadd.xlane.f32.xlu0 %v1894
    %v1896 = vpop.xlane.xlu0 %1895
    %v1897 = vmul.f32 %v1893, %v1726
    %v1898 = vmul.f32 %v1896, %v1726
    %v1899 = vadd.f32 %v1897, 1e-05
    %v1900 = vadd.f32 %v1898, 1e-05
    %v1901 = vrsqrt.pop %v1899
    %v1902 = vrsqrt.pop %v1900
    %v1903 = vmul.f32 %v1887, %v1901
    %v1904 = vmul.f32 %v1888, %v1902
    %v1905 = vlaneseq
    %v1906 = vshrl.u32 %v1905, 7
    %v1907 = vsub.s32 0, %v1906
    %v1908 = vrot.slane %v95, %v1907
    %v1909 = vmul.f32 %v1903, %v1908
    %v1910 = vmul.f32 %v1904, %v1908
    %v1911 = vlaneseq
    %v1912 = vshrl.u32 %v1911, 7
    %v1913 = vsub.s32 0, %v1912
    %v1914 = vrot.slane %v96, %v1913
    %v1915 = vadd.f32 %v1909, %v1914
    %v1916 = vadd.f32 %v1910, %v1914
    %1917 = vst.msk [vmem:[#allocation8] sm:$0xff] %vm104, %v1915
    %1918 = vst.msk [vmem:[#allocation8 + $0x8] sm:$0xff] %vm104, %v1916
    // Predicated region
    $region30: #{tpu_custom_call.1} parent=1 // pred_check
      _
    $region31: #{tpu_custom_call.1} parent=1 // pred_check_branch
      %1920 = sbr.rel (0) target = $region33
    $region32: #{tpu_custom_call.1} parent=1 // pred_region
      %s1922 = ssub.s32 256, 256
      %1923 = vsyncadd [#allocation4], %s1922
      %s1924 = sshll.u32 [#allocation8], 4
      %s1925 = int_to_ptr.vmem [resolvable:$true] %s1924
      %1930 = dma.vmem_to_hbm [thread:$0]  %s1925, 256, %s4, [#allocation4], 128, 128, 8
    $region33: #{tpu_custom_call.1} parent=1 // pred_fallthru
      _
    // Predicated region
    $region34: #{tpu_custom_call.1} parent=1 // pred_check
      _
    $region35: #{tpu_custom_call.1} parent=1 // pred_check_branch
      %1932 = sbr.rel (0) target = $region37
    $region36: #{tpu_custom_call.1} parent=1 // pred_region
      %1933 = dma.done [#allocation4], 256
    $region37: #{tpu_custom_call.1} parent=1 // pred_fallthru
      _
    %1934 = vsyncpa [#allocation3], 1
    %1935 = vsyncpa [#allocation6], 1
    %1936 = vsyncpa [#allocation4], 1

</llo_original>
